<compile_context>
chip_gen: v6e
topology: v6e:2x2x1
jax: 0.10.0
libtpu: 0.0.40
codegen_flags: <defaults>
</compile_context>

<pallas_src>
import math
from functools import partial

import jax
import jax.numpy as jnp
from jax.experimental import pallas as pl
from jax.experimental.pallas import tpu as pltpu

# ---- "config.yaml" constants ----
# TODO(synk): read_config() reads config.yaml in the original module; values hard-coded here.
N_LAYERS = 8
HIDDEN_SIZE = 32
USE_PE = True
L_Z = 7
L_XY = 11
N_FREQ = 2 * L_XY + L_Z        # 29 distinct (coordinate, frequency) pairs
INPUT_SIZE = 2 * N_FREQ        # 58 = 4*l_xy + 2*l_z
FREQ_PAD = 32                  # phase rows padded 29 -> 32 (sublane aligned)
SINCOS_ROWS = 2 * FREQ_PAD     # 64: stacked [sin; cos] rows (fused layer-0 K)
SKIP_ROWS = 3 * FREQ_PAD       # 96: [sin; cos; h3] rows (fused skip-layer K)
NEG_SLOPE = 0.01               # nn.LeakyReLU() default


# --------------------------------------------------------------------------------------
# Pallas kernel
# --------------------------------------------------------------------------------------
def _nf_kernel(pts_ref, w0_ref, w4_ref, wh_ref, aux_ref, out_ref, sc_ref):
    """Feature-major NeuralField forward for one lane tile.

    pts_ref : (3, TM)   f32   rows z, x, y
    w0_ref  : (32, 64)  bf16  fused layer-0 weight  [sin | cos (+b0 in col 63)]
    w4_ref  : (32, 96)  bf16  fused skip weight     [sin | cos (+b4 in col 63) | h]
    wh_ref  : (168, 32) bf16  W1,W2,W3,W5,W6 (32 rows each) + W7 (8 rows, row 160 real)
    aux_ref : (32, 16)  f32   cols 0..4 = biases b1,b2,b3,b5,b6; [0,5] = b7;
                              cols 8,9,10 = frequency columns for z, x, y
    out_ref : (1, TM)   f32
    sc_ref  : (96, TM)  bf16  scratch: rows 0..31 sin, 32..63 cos, 64..95 h3
    """
    H = HIDDEN_SIZE
    pts = pts_ref[...]
    aux = aux_ref[...]

    def b(j):                               # bias column j -> (32, 1) f32
        return aux[:, j:j + 1]

    def lrelu(h):
        return jnp.where(h >= 0, h, NEG_SLOPE * h)

    def dot32(w, x):                        # bf16 MXU matmul, f32 accumulate
        return jnp.dot(w, x, preferred_element_type=jnp.float32)

    def wh(k, rows=H):                      # hidden-slab part k -> (rows, 32) bf16
        return wh_ref[pl.ds(k * H, rows), :]

    # ---- positional encoding: phases (32, TM) f32; rows 29..31 are exactly 0 ----
    phases = (aux[:, 8:9] * pts[0:1, :]        # z frequency column
              + aux[:, 9:10] * pts[1:2, :]     # x frequency column
              + aux[:, 10:11] * pts[2:3, :])   # y frequency column
    sc_ref[pl.ds(0, H), :] = jnp.sin(phases).astype(jnp.bfloat16)
    sc_ref[pl.ds(H, H), :] = jnp.cos(phases).astype(jnp.bfloat16)  # pad rows -> cos(0)=1

    # ---- nf1 layer 0: single K=64 matmul; bias b0 folded into the cos(0)=1 column ----
    h = lrelu(dot32(w0_ref[...], sc_ref[pl.ds(0, SINCOS_ROWS), :]))
    # ---- nf1 layers 1..3 ----
    h = lrelu(dot32(wh(0), h.astype(jnp.bfloat16)) + b(0))
    h = lrelu(dot32(wh(1), h.astype(jnp.bfloat16)) + b(1))
    h = lrelu(dot32(wh(2), h.astype(jnp.bfloat16)) + b(2))

    # ---- skip layer: single K=96 matmul over [sin; cos; h3]; bias b4 folded ----
    sc_ref[pl.ds(SINCOS_ROWS, H), :] = h.astype(jnp.bfloat16)
    h = lrelu(dot32(w4_ref[...], sc_ref[...]))

    # ---- nf2 middle layers ----
    h = lrelu(dot32(wh(3), h.astype(jnp.bfloat16)) + b(3))
    h = lrelu(dot32(wh(4), h.astype(jnp.bfloat16)) + b(4))

    # ---- final Linear(32, 1): W7 packed in rows 160..167 (only row 160 is real) ----
    out = dot32(wh(5, rows=8), h.astype(jnp.bfloat16))      # (8, TM)
    out_ref[...] = out[0:1, :] + aux[0:1, 5:6]              # lane-dense (1, TM) store


# --------------------------------------------------------------------------------------
# Parameter packing (reference layout -> fused feature-major arrays). Call ONCE.
# --------------------------------------------------------------------------------------
def _freqs(n):
    return [float((2.0 ** l) * math.pi) for l in range(n)]


def pack_params(params):
    """params: list of 8 (w (in,out), b (1,out)) in reference/torch layout.
    Returns (w0f (32,64) bf16, w4f (32,96) bf16, wh (168,32) bf16, aux (32,16) f32).
    Hoisted out of the per-call path per the perf review."""
    H = HIDDEN_SIZE

    w0, b0 = params[0]            # (58, 32), (1, 32); rows interleaved [sin, cos] x 29
    w4, b4 = params[4]            # (90, 32) = [enc(58); h(32)] rows

    # fused layer-0 weight (32, 64): cols 0..28 sin, 32..60 cos, col 63 = b0 (cos(0)=1 row)
    w0f = jnp.zeros((H, SINCOS_ROWS), jnp.float32)
    w0f = w0f.at[:, 0:N_FREQ].set(w0[0::2, :].T)
    w0f = w0f.at[:, FREQ_PAD:FREQ_PAD + N_FREQ].set(w0[1::2, :].T)
    w0f = w0f.at[:, SINCOS_ROWS - 1].set(b0[0, :])

    # fused skip weight (32, 96): cols 0..63 as above, col 63 = b4, cols 64..95 = h part
    w4f = jnp.zeros((H, SKIP_ROWS), jnp.float32)
    w4f = w4f.at[:, 0:N_FREQ].set(w4[0:INPUT_SIZE:2, :].T)
    w4f = w4f.at[:, FREQ_PAD:FREQ_PAD + N_FREQ].set(w4[1:INPUT_SIZE:2, :].T)
    w4f = w4f.at[:, SINCOS_ROWS - 1].set(b4[0, :])
    w4f = w4f.at[:, SINCOS_ROWS:SKIP_ROWS].set(w4[INPUT_SIZE:, :].T)

    # hidden slab (168, 32): W1, W2, W3, W5, W6 then W7 padded 1 -> 8 rows
    wh = jnp.concatenate(
        [params[i][0].T for i in (1, 2, 3, 5, 6)]
        + [jnp.pad(params[7][0].T, ((0, 7), (0, 0)))], axis=0)

    # aux (32, 16) f32: cols 0..4 biases b1,b2,b3,b5,b6; [0,5] final bias; 8..10 freqs
    aux = jnp.zeros((H, 16), jnp.float32)
    for j, li in enumerate((1, 2, 3, 5, 6)):
        aux = aux.at[:, j].set(params[li][1][0, :].astype(jnp.float32))
    aux = aux.at[0, 5].set(params[7][1][0, 0].astype(jnp.float32))
    # Phase row order: x (l=0..10), y (l=0..10), z (l=0..6), 3 zero rows.
    # aux col 8 multiplies pts row 0 (=z), col 9 -> row 1 (=x), col 10 -> row 2 (=y).
    fxy = jnp.asarray(_freqs(L_XY), jnp.float32)
    fz = jnp.asarray(_freqs(L_Z), jnp.float32)
    aux = aux.at[0:L_XY, 9].set(fxy)
    aux = aux.at[L_XY:2 * L_XY, 10].set(fxy)
    aux = aux.at[2 * L_XY:2 * L_XY + L_Z, 8].set(fz)

    return (w0f.astype(jnp.bfloat16), w4f.astype(jnp.bfloat16),
            wh.astype(jnp.bfloat16), aux)


# --------------------------------------------------------------------------------------
# Wrapper
# --------------------------------------------------------------------------------------
def _round_up(x, m):
    return ((x + m - 1) // m) * m


@partial(jax.jit, static_argnames=("tile_m",))
def _forward_impl(pts, packed, tile_m):
    w0f, w4f, wh, aux = packed
    N = pts.shape[0]
    n_pad = _round_up(N, tile_m)
    grid = (n_pad // tile_m,)

    # feature-major points (3, n_pad), rows z, x, y; padded columns are zeros.
    pts_fm = jnp.zeros((3, n_pad), jnp.float32).at[:, :N].set(pts.astype(jnp.float32).T)

    out = pl.pallas_call(
        _nf_kernel,
        out_shape=jax.ShapeDtypeStruct((1, n_pad), jnp.float32),
        grid_spec=pltpu.PrefetchScalarGridSpec(
            num_scalar_prefetch=0,
            grid=grid,
            in_specs=[
                pl.BlockSpec((3, tile_m), lambda i: (0, i)),   # points tile
                pl.BlockSpec(w0f.shape, lambda i: (0, 0)),     # resident fused W0
                pl.BlockSpec(w4f.shape, lambda i: (0, 0)),     # resident fused W4
                pl.BlockSpec(wh.shape, lambda i: (0, 0)),      # resident hidden slab
                pl.BlockSpec(aux.shape, lambda i: (0, 0)),     # resident bias/freq aux
            ],
            out_specs=pl.BlockSpec((1, tile_m), lambda i: (0, i)),  # lane-dense output
            scratch_shapes=[pltpu.VMEM((SKIP_ROWS, tile_m), jnp.bfloat16)],
        ),
        compiler_params=pltpu.CompilerParams(
            dimension_semantics=("parallel",),
        ),
    )(pts_fm, w0f, w4f, wh, aux)

    return out[0, :N].reshape(N, 1)


def neural_field_forward(pts, packed, tile_m=None):
    """pts: (N, 3) with columns (z, x, y); packed: result of pack_params()."""
    if tile_m is None:
        N = pts.shape[0]
        # >= 2 grid steps so both v7x TensorCores get work at small N; big lane tiles
        # (8192) at large N amortize per-step overhead; always a multiple of 128.
        tile_m = max(128, min(8192, _round_up(-(-N // 2), 128)))
    return _forward_impl(pts, packed, tile_m)


# --------------------------------------------------------------------------------------
# Pure-JAX reference (mirrors the torch module exactly, interleaved PE ordering)
# --------------------------------------------------------------------------------------
def _positional_encoding_ref(pts):
    z = pts[:, 0:1]
    x = pts[:, 1:2]
    y = pts[:, 2:3]
    feats = []
    for l in range(L_XY):
        f = (2.0 ** l) * math.pi
        feats.append(jnp.sin(f * x))
        feats.append(jnp.cos(f * x))
    for l in range(L_XY):
        f = (2.0 ** l) * math.pi
        feats.append(jnp.sin(f * y))
        feats.append(jnp.cos(f * y))
    for l in range(L_Z):
        f = (2.0 ** l) * math.pi
        feats.append(jnp.sin(f * z))
        feats.append(jnp.cos(f * z))
    return jnp.concatenate(feats, axis=-1)


def neural_field_reference(pts, params):
    enc = _positional_encoding_ref(pts.astype(jnp.float32))

    def lrelu(h):
        return jnp.where(h >= 0, h, NEG_SLOPE * h)

    h = enc
    for i in range(4):
        w, bb = params[i]
        h = lrelu(h @ w + bb)
    cat = jnp.concatenate([enc, h], axis=-1)
    h = cat
    for i in range(4, 7):
        w, bb = params[i]
        h = lrelu(h @ w + bb)
    w, bb = params[7]
    return h @ w + bb


def init_params(key):
    """Deterministic init mimicking nn.Linear (uniform +/- 1/sqrt(fan_in)), ref layout."""
    dims = [
        (INPUT_SIZE, HIDDEN_SIZE),                    # nf1[0]
        (HIDDEN_SIZE, HIDDEN_SIZE),                   # nf1[2]
        (HIDDEN_SIZE, HIDDEN_SIZE),                   # nf1[4]
        (HIDDEN_SIZE, HIDDEN_SIZE),                   # nf1[6]
        (HIDDEN_SIZE + INPUT_SIZE, HIDDEN_SIZE),      # nf2[0]
        (HIDDEN_SIZE, HIDDEN_SIZE),                   # nf2[2]
        (HIDDEN_SIZE, HIDDEN_SIZE),                   # nf2[4]
        (HIDDEN_SIZE, 1),                             # nf2[6]
    ]
    params = []
    for (fan_in, fan_out) in dims:
        key, kw, kb = jax.random.split(key, 3)
        bound = 1.0 / math.sqrt(fan_in)
        w = jax.random.uniform(kw, (fan_in, fan_out), jnp.float32, -bound, bound)
        b = jax.random.uniform(kb, (1, fan_out), jnp.float32, -bound, bound)
        params.append((w, b))
    return params


if __name__ == "__main__":
    key = jax.random.PRNGKey(0)
    k_pts, k_params = jax.random.split(key)

    N = 256
    pts = jax.random.uniform(k_pts, (N, 3), jnp.float32)   # (z, x, y) coords in [0, 1)
    params = init_params(k_params)
    packed = pack_params(params)        # hoisted: pack once at "model load" time

    out = neural_field_forward(pts, packed)
    out = jax.block_until_ready(out)

    ref = neural_field_reference(pts, params)
    assert out.shape == (N, 1)
    # bf16 MXU operands (f32 accumulation) -> tolerance relaxed vs the f32-only kernel,
    # as anticipated by the perf review.
    assert jnp.allclose(out, ref, atol=3e-2, rtol=3e-2), "mismatch vs. JAX reference"

    print("KERNEL_OK")
</pallas_src>

<mosaic_0001>
module attributes {stable_mosaic.version = 11 : i64} {
  func.func @_nf_kernel(%arg0: i32, %arg1: memref<3x128xf32, #tpu.memory_space<vmem>>, %arg2: memref<32x64xbf16, #tpu.memory_space<vmem>>, %arg3: memref<32x96xbf16, #tpu.memory_space<vmem>>, %arg4: memref<168x32xbf16, #tpu.memory_space<vmem>>, %arg5: memref<32x16xf32, #tpu.memory_space<vmem>>, %arg6: memref<1x128xf32, #tpu.memory_space<vmem>>, %arg7: memref<96x128xbf16, #tpu.memory_space<vmem>>) attributes {dimension_semantics = [#tpu.dimension_semantics<parallel>], iteration_bounds = array<i64: 2>, scalar_prefetch = 0 : i64, scratch_operands = 1 : i64, tpu.core_type = #tpu.core_type<tc>, window_params = [{transform_indices = @transform_0, window_bounds = array<i64: 3, 128>}, {pipeline_mode = #tpu.pipeline_mode<synchronous>, transform_indices = @transform_1, window_bounds = array<i64: 32, 64>}, {pipeline_mode = #tpu.pipeline_mode<synchronous>, transform_indices = @transform_2, window_bounds = array<i64: 32, 96>}, {pipeline_mode = #tpu.pipeline_mode<synchronous>, transform_indices = @transform_3, window_bounds = array<i64: 168, 32>}, {pipeline_mode = #tpu.pipeline_mode<synchronous>, transform_indices = @transform_4, window_bounds = array<i64: 32, 16>}, {transform_indices = @transform_5, window_bounds = array<i64: 1, 128>}]} {
    %c0 = arith.constant 0 : index
    %c0_0 = arith.constant 0 : index
    %0 = vector.load %arg1[%c0, %c0_0] : memref<3x128xf32, #tpu.memory_space<vmem>>, vector<3x128xf32>
    %c0_1 = arith.constant 0 : index
    %c0_2 = arith.constant 0 : index
    %1 = vector.load %arg5[%c0_1, %c0_2] : memref<32x16xf32, #tpu.memory_space<vmem>>, vector<32x16xf32>
    %2 = vector.extract_strided_slice %1 {offsets = [0, 8], sizes = [32, 1], strides = [1, 1]} : vector<32x16xf32> to vector<32x1xf32>
    %3 = vector.extract_strided_slice %0 {offsets = [0, 0], sizes = [1, 128], strides = [1, 1]} : vector<3x128xf32> to vector<1x128xf32>
    %4 = vector.broadcast %2 : vector<32x1xf32> to vector<32x128xf32>
    %5 = vector.broadcast %3 : vector<1x128xf32> to vector<32x128xf32>
    %6 = arith.mulf %4, %5 : vector<32x128xf32>
    %7 = vector.extract_strided_slice %1 {offsets = [0, 9], sizes = [32, 1], strides = [1, 1]} : vector<32x16xf32> to vector<32x1xf32>
    %8 = vector.extract_strided_slice %0 {offsets = [1, 0], sizes = [1, 128], strides = [1, 1]} : vector<3x128xf32> to vector<1x128xf32>
    %9 = vector.broadcast %7 : vector<32x1xf32> to vector<32x128xf32>
    %10 = vector.broadcast %8 : vector<1x128xf32> to vector<32x128xf32>
    %11 = arith.mulf %9, %10 : vector<32x128xf32>
    %12 = arith.addf %6, %11 : vector<32x128xf32>
    %13 = vector.extract_strided_slice %1 {offsets = [0, 10], sizes = [32, 1], strides = [1, 1]} : vector<32x16xf32> to vector<32x1xf32>
    %14 = vector.extract_strided_slice %0 {offsets = [2, 0], sizes = [1, 128], strides = [1, 1]} : vector<3x128xf32> to vector<1x128xf32>
    %15 = vector.broadcast %13 : vector<32x1xf32> to vector<32x128xf32>
    %16 = vector.broadcast %14 : vector<1x128xf32> to vector<32x128xf32>
    %17 = arith.mulf %15, %16 : vector<32x128xf32>
    %18 = arith.addf %12, %17 : vector<32x128xf32>
    %19 = math.sin %18 : vector<32x128xf32>
    %20 = arith.truncf %19 : vector<32x128xf32> to vector<32x128xbf16>
    %c0_3 = arith.constant 0 : index
    %c0_4 = arith.constant 0 : index
    %21 = vector.load %arg7[%c0_3, %c0_4] : memref<96x128xbf16, #tpu.memory_space<vmem>>, vector<32x128xbf16>
    tpu.vector_store %arg7[%c0_3, %c0_4], %20 {strides = array<i32>} : memref<96x128xbf16, #tpu.memory_space<vmem>>, vector<32x128xbf16>,
    %22 = math.cos %18 : vector<32x128xf32>
    %23 = arith.truncf %22 : vector<32x128xf32> to vector<32x128xbf16>
    %c32 = arith.constant 32 : index
    %c0_5 = arith.constant 0 : index
    %24 = vector.load %arg7[%c32, %c0_5] : memref<96x128xbf16, #tpu.memory_space<vmem>>, vector<32x128xbf16>
    tpu.vector_store %arg7[%c32, %c0_5], %23 {strides = array<i32>} : memref<96x128xbf16, #tpu.memory_space<vmem>>, vector<32x128xbf16>,
    %c0_6 = arith.constant 0 : index
    %c0_7 = arith.constant 0 : index
    %25 = vector.load %arg2[%c0_6, %c0_7] : memref<32x64xbf16, #tpu.memory_space<vmem>>, vector<32x64xbf16>
    %c0_8 = arith.constant 0 : index
    %c0_9 = arith.constant 0 : index
    %26 = vector.load %arg7[%c0_8, %c0_9] : memref<96x128xbf16, #tpu.memory_space<vmem>>, vector<64x128xbf16>
    %cst = arith.constant dense<0.000000e+00> : vector<32x128xf32>
    %27 = tpu.matmul %25, %26, %cst {dimension_numbers = #tpu.dot_dimension_numbers<[1], [0], [0], [1], [0, 0, 1, 1], [], []>} : vector<32x64xbf16>, vector<64x128xbf16>, vector<32x128xf32> -> vector<32x128xf32>
    %cst_10 = arith.constant 0.000000e+00 : f32
    %28 = vector.broadcast %cst_10 : f32 to vector<32x128xf32>
    %29 = arith.cmpf oge, %27, %28 : vector<32x128xf32>
    %cst_11 = arith.constant 0.00999999977 : f32
    %30 = vector.broadcast %cst_11 : f32 to vector<32x128xf32>
    %31 = arith.mulf %30, %27 : vector<32x128xf32>
    %32 = arith.select %29, %27, %31 : vector<32x128xi1>, vector<32x128xf32>
    %c0_12 = arith.constant 0 : index
    %c0_13 = arith.constant 0 : index
    %33 = vector.load %arg4[%c0_12, %c0_13] : memref<168x32xbf16, #tpu.memory_space<vmem>>, vector<32x32xbf16>
    %34 = arith.truncf %32 : vector<32x128xf32> to vector<32x128xbf16>
    %cst_14 = arith.constant dense<0.000000e+00> : vector<32x128xf32>
    %35 = tpu.matmul %33, %34, %cst_14 {dimension_numbers = #tpu.dot_dimension_numbers<[1], [0], [0], [1], [0, 0, 1, 1], [], []>} : vector<32x32xbf16>, vector<32x128xbf16>, vector<32x128xf32> -> vector<32x128xf32>
    %36 = vector.extract_strided_slice %1 {offsets = [0, 0], sizes = [32, 1], strides = [1, 1]} : vector<32x16xf32> to vector<32x1xf32>
    %37 = vector.broadcast %36 : vector<32x1xf32> to vector<32x128xf32>
    %38 = arith.addf %35, %37 : vector<32x128xf32>
    %cst_15 = arith.constant 0.000000e+00 : f32
    %39 = vector.broadcast %cst_15 : f32 to vector<32x128xf32>
    %40 = arith.cmpf oge, %38, %39 : vector<32x128xf32>
    %cst_16 = arith.constant 0.00999999977 : f32
    %41 = vector.broadcast %cst_16 : f32 to vector<32x128xf32>
    %42 = arith.mulf %41, %38 : vector<32x128xf32>
    %43 = arith.select %40, %38, %42 : vector<32x128xi1>, vector<32x128xf32>
    %c32_17 = arith.constant 32 : index
    %c0_18 = arith.constant 0 : index
    %44 = vector.load %arg4[%c32_17, %c0_18] : memref<168x32xbf16, #tpu.memory_space<vmem>>, vector<32x32xbf16>
    %45 = arith.truncf %43 : vector<32x128xf32> to vector<32x128xbf16>
    %cst_19 = arith.constant dense<0.000000e+00> : vector<32x128xf32>
    %46 = tpu.matmul %44, %45, %cst_19 {dimension_numbers = #tpu.dot_dimension_numbers<[1], [0], [0], [1], [0, 0, 1, 1], [], []>} : vector<32x32xbf16>, vector<32x128xbf16>, vector<32x128xf32> -> vector<32x128xf32>
    %47 = vector.extract_strided_slice %1 {offsets = [0, 1], sizes = [32, 1], strides = [1, 1]} : vector<32x16xf32> to vector<32x1xf32>
    %48 = vector.broadcast %47 : vector<32x1xf32> to vector<32x128xf32>
    %49 = arith.addf %46, %48 : vector<32x128xf32>
    %cst_20 = arith.constant 0.000000e+00 : f32
    %50 = vector.broadcast %cst_20 : f32 to vector<32x128xf32>
    %51 = arith.cmpf oge, %49, %50 : vector<32x128xf32>
    %cst_21 = arith.constant 0.00999999977 : f32
    %52 = vector.broadcast %cst_21 : f32 to vector<32x128xf32>
    %53 = arith.mulf %52, %49 : vector<32x128xf32>
    %54 = arith.select %51, %49, %53 : vector<32x128xi1>, vector<32x128xf32>
    %c64 = arith.constant 64 : index
    %c0_22 = arith.constant 0 : index
    %55 = vector.load %arg4[%c64, %c0_22] : memref<168x32xbf16, #tpu.memory_space<vmem>>, vector<32x32xbf16>
    %56 = arith.truncf %54 : vector<32x128xf32> to vector<32x128xbf16>
    %cst_23 = arith.constant dense<0.000000e+00> : vector<32x128xf32>
    %57 = tpu.matmul %55, %56, %cst_23 {dimension_numbers = #tpu.dot_dimension_numbers<[1], [0], [0], [1], [0, 0, 1, 1], [], []>} : vector<32x32xbf16>, vector<32x128xbf16>, vector<32x128xf32> -> vector<32x128xf32>
    %58 = vector.extract_strided_slice %1 {offsets = [0, 2], sizes = [32, 1], strides = [1, 1]} : vector<32x16xf32> to vector<32x1xf32>
    %59 = vector.broadcast %58 : vector<32x1xf32> to vector<32x128xf32>
    %60 = arith.addf %57, %59 : vector<32x128xf32>
    %cst_24 = arith.constant 0.000000e+00 : f32
    %61 = vector.broadcast %cst_24 : f32 to vector<32x128xf32>
    %62 = arith.cmpf oge, %60, %61 : vector<32x128xf32>
    %cst_25 = arith.constant 0.00999999977 : f32
    %63 = vector.broadcast %cst_25 : f32 to vector<32x128xf32>
    %64 = arith.mulf %63, %60 : vector<32x128xf32>
    %65 = arith.select %62, %60, %64 : vector<32x128xi1>, vector<32x128xf32>
    %66 = arith.truncf %65 : vector<32x128xf32> to vector<32x128xbf16>
    %c64_26 = arith.constant 64 : index
    %c0_27 = arith.constant 0 : index
    %67 = vector.load %arg7[%c64_26, %c0_27] : memref<96x128xbf16, #tpu.memory_space<vmem>>, vector<32x128xbf16>
    tpu.vector_store %arg7[%c64_26, %c0_27], %66 {strides = array<i32>} : memref<96x128xbf16, #tpu.memory_space<vmem>>, vector<32x128xbf16>,
    %c0_28 = arith.constant 0 : index
    %c0_29 = arith.constant 0 : index
    %68 = vector.load %arg3[%c0_28, %c0_29] : memref<32x96xbf16, #tpu.memory_space<vmem>>, vector<32x96xbf16>
    %c0_30 = arith.constant 0 : index
    %c0_31 = arith.constant 0 : index
    %69 = vector.load %arg7[%c0_30, %c0_31] : memref<96x128xbf16, #tpu.memory_space<vmem>>, vector<96x128xbf16>
    %cst_32 = arith.constant dense<0.000000e+00> : vector<32x128xf32>
    %70 = tpu.matmul %68, %69, %cst_32 {dimension_numbers = #tpu.dot_dimension_numbers<[1], [0], [0], [1], [0, 0, 1, 1], [], []>} : vector<32x96xbf16>, vector<96x128xbf16>, vector<32x128xf32> -> vector<32x128xf32>
    %cst_33 = arith.constant 0.000000e+00 : f32
    %71 = vector.broadcast %cst_33 : f32 to vector<32x128xf32>
    %72 = arith.cmpf oge, %70, %71 : vector<32x128xf32>
    %cst_34 = arith.constant 0.00999999977 : f32
    %73 = vector.broadcast %cst_34 : f32 to vector<32x128xf32>
    %74 = arith.mulf %73, %70 : vector<32x128xf32>
    %75 = arith.select %72, %70, %74 : vector<32x128xi1>, vector<32x128xf32>
    %c96 = arith.constant 96 : index
    %c0_35 = arith.constant 0 : index
    %76 = vector.load %arg4[%c96, %c0_35] : memref<168x32xbf16, #tpu.memory_space<vmem>>, vector<32x32xbf16>
    %77 = arith.truncf %75 : vector<32x128xf32> to vector<32x128xbf16>
    %cst_36 = arith.constant dense<0.000000e+00> : vector<32x128xf32>
    %78 = tpu.matmul %76, %77, %cst_36 {dimension_numbers = #tpu.dot_dimension_numbers<[1], [0], [0], [1], [0, 0, 1, 1], [], []>} : vector<32x32xbf16>, vector<32x128xbf16>, vector<32x128xf32> -> vector<32x128xf32>
    %79 = vector.extract_strided_slice %1 {offsets = [0, 3], sizes = [32, 1], strides = [1, 1]} : vector<32x16xf32> to vector<32x1xf32>
    %80 = vector.broadcast %79 : vector<32x1xf32> to vector<32x128xf32>
    %81 = arith.addf %78, %80 : vector<32x128xf32>
    %cst_37 = arith.constant 0.000000e+00 : f32
    %82 = vector.broadcast %cst_37 : f32 to vector<32x128xf32>
    %83 = arith.cmpf oge, %81, %82 : vector<32x128xf32>
    %cst_38 = arith.constant 0.00999999977 : f32
    %84 = vector.broadcast %cst_38 : f32 to vector<32x128xf32>
    %85 = arith.mulf %84, %81 : vector<32x128xf32>
    %86 = arith.select %83, %81, %85 : vector<32x128xi1>, vector<32x128xf32>
    %c128 = arith.constant 128 : index
    %c0_39 = arith.constant 0 : index
    %87 = vector.load %arg4[%c128, %c0_39] : memref<168x32xbf16, #tpu.memory_space<vmem>>, vector<32x32xbf16>
    %88 = arith.truncf %86 : vector<32x128xf32> to vector<32x128xbf16>
    %cst_40 = arith.constant dense<0.000000e+00> : vector<32x128xf32>
    %89 = tpu.matmul %87, %88, %cst_40 {dimension_numbers = #tpu.dot_dimension_numbers<[1], [0], [0], [1], [0, 0, 1, 1], [], []>} : vector<32x32xbf16>, vector<32x128xbf16>, vector<32x128xf32> -> vector<32x128xf32>
    %90 = vector.extract_strided_slice %1 {offsets = [0, 4], sizes = [32, 1], strides = [1, 1]} : vector<32x16xf32> to vector<32x1xf32>
    %91 = vector.broadcast %90 : vector<32x1xf32> to vector<32x128xf32>
    %92 = arith.addf %89, %91 : vector<32x128xf32>
    %cst_41 = arith.constant 0.000000e+00 : f32
    %93 = vector.broadcast %cst_41 : f32 to vector<32x128xf32>
    %94 = arith.cmpf oge, %92, %93 : vector<32x128xf32>
    %cst_42 = arith.constant 0.00999999977 : f32
    %95 = vector.broadcast %cst_42 : f32 to vector<32x128xf32>
    %96 = arith.mulf %95, %92 : vector<32x128xf32>
    %97 = arith.select %94, %92, %96 : vector<32x128xi1>, vector<32x128xf32>
    %c160 = arith.constant 160 : index
    %c0_43 = arith.constant 0 : index
    %98 = vector.load %arg4[%c160, %c0_43] : memref<168x32xbf16, #tpu.memory_space<vmem>>, vector<8x32xbf16>
    %99 = arith.truncf %97 : vector<32x128xf32> to vector<32x128xbf16>
    %cst_44 = arith.constant dense<0.000000e+00> : vector<8x128xf32>
    %100 = tpu.matmul %98, %99, %cst_44 {dimension_numbers = #tpu.dot_dimension_numbers<[1], [0], [0], [1], [0, 0, 1, 1], [], []>} : vector<8x32xbf16>, vector<32x128xbf16>, vector<8x128xf32> -> vector<8x128xf32>
    %101 = vector.extract_strided_slice %100 {offsets = [0, 0], sizes = [1, 128], strides = [1, 1]} : vector<8x128xf32> to vector<1x128xf32>
    %102 = vector.extract_strided_slice %1 {offsets = [0, 5], sizes = [1, 1], strides = [1, 1]} : vector<32x16xf32> to vector<1x1xf32>
    %103 = vector.broadcast %102 : vector<1x1xf32> to vector<1x128xf32>
    %104 = arith.addf %101, %103 : vector<1x128xf32>
    %c0_45 = arith.constant 0 : index
    %c0_46 = arith.constant 0 : index
    %105 = vector.load %arg6[%c0_45, %c0_46] : memref<1x128xf32, #tpu.memory_space<vmem>>, vector<1x128xf32>
    tpu.vector_store %arg6[%c0_45, %c0_46], %104 {strides = array<i32>} : memref<1x128xf32, #tpu.memory_space<vmem>>, vector<1x128xf32>,
    return
  }
  func.func @transform_0(%arg0: i32) -> (i32, i32) {
    %c0_i32 = arith.constant 0 : i32
    %c0_i32_0 = arith.constant 0 : i32
    return %c0_i32, %arg0 : i32, i32
  }
  func.func @transform_1(%arg0: i32) -> (i32, i32) {
    %c0_i32 = arith.constant 0 : i32
    %c0_i32_0 = arith.constant 0 : i32
    %c0_i32_1 = arith.constant 0 : i32
    return %c0_i32, %c0_i32_0 : i32, i32
  }
  func.func @transform_2(%arg0: i32) -> (i32, i32) {
    %c0_i32 = arith.constant 0 : i32
    %c0_i32_0 = arith.constant 0 : i32
    %c0_i32_1 = arith.constant 0 : i32
    return %c0_i32, %c0_i32_0 : i32, i32
  }
  func.func @transform_3(%arg0: i32) -> (i32, i32) {
    %c0_i32 = arith.constant 0 : i32
    %c0_i32_0 = arith.constant 0 : i32
    %c0_i32_1 = arith.constant 0 : i32
    return %c0_i32, %c0_i32_0 : i32, i32
  }
  func.func @transform_4(%arg0: i32) -> (i32, i32) {
    %c0_i32 = arith.constant 0 : i32
    %c0_i32_0 = arith.constant 0 : i32
    %c0_i32_1 = arith.constant 0 : i32
    return %c0_i32, %c0_i32_0 : i32, i32
  }
  func.func @transform_5(%arg0: i32) -> (i32, i32) {
    %c0_i32 = arith.constant 0 : i32
    %c0_i32_0 = arith.constant 0 : i32
    return %c0_i32, %arg0 : i32, i32
  }
}

</mosaic_0001>

<llo_original>
// kernel: _forward_impl.1
$region0: #{_forward_impl.1}
  #allocation0 [shape = 'u32[]', space=smem, size = 0x4, offset = 0x4, fixed_abs, tag = 'smem constant byte address 0x4 - core index']
  #allocation1 [shape = 'u32[144,128]{1,0:T(1,128)}', space=vmem, size = 0x12000, scoped, tag = 'internal scratch']
  #allocation2 [shape = 'bf16[96,128]{1,0:T(8,128)(2,1)}', space=vmem, size = 0x6000, scoped, tag = 'scratch operand']
  %s0 = inlined_call_operand.vmem [shape: f32[3,256], index: 0, kind: input, shape index: {}]
  %s1 = inlined_call_operand.vmem [shape: bf16[32,64], index: 1, kind: input, shape index: {}]
  %s2 = inlined_call_operand.vmem [shape: bf16[32,96], index: 2, kind: input, shape index: {}]
  %s3 = inlined_call_operand.vmem [shape: bf16[168,32], index: 3, kind: input, shape index: {}]
  %s4 = inlined_call_operand.vmem [shape: f32[32,16], index: 4, kind: input, shape index: {}]
  %s5 = inlined_call_operand.hbm [shape: f32[1,256], index: 5, kind: output, shape index: {}]
  %s6 = sld [smem:[#allocation0]]
  $region53: #{_forward_impl.1} parent=0
    _
  %s8 = ssub.s32 1, %s6
  %s9 = scalar_select 0, %s8, %s6
  $region1: #{_forward_impl.1} parent=0
    #allocation3 [shape = 'u8[1024]{0}', space=vmem, size = 0x400, scoped, tag = 'output window, operand 0']
    #allocation4 [shape = 's32[2]{0}', space=sflag, size = 0x8, scoped, tag = 'scoped memory for _forward_impl.1']
    %10 = vsyncpa [#allocation4], 0
    %s11 = scalar_lea.sflag [#allocation4], 1
    %12 = vsyncpa %s11, 0
    loop: start=0, step=1, limit=4
    $region2: #{_forward_impl.1} parent=1 // loop_pre_header
      _
    $region3: #{_forward_impl.1} parent=1 // loop_header
      %s14 = sphi 0, %s18
      %p15 = scmp.ge.s32.totalorder %s14, 4
      %s24 = sphi 0, %s26
      %s27 = sphi 0, %s24
      %s28 = sphi 0, %s27
      %s44 = sphi 0, %s28
      %s48 = sphi 0, %s48
      %s50 = sphi 0, %s48
      %s51 = sphi 0, %s50
      %s65 = sphi 0, %s51
      %s69 = sphi 0, %s69
      %s71 = sphi 0, %s69
      %s72 = sphi 0, %s71
      %s86 = sphi 0, %s72
      %s90 = sphi 0, %s90
      %s92 = sphi 0, %s90
      %s93 = sphi 0, %s92
      %s107 = sphi 0, %s93
      %s111 = sphi 0, %s111
      %s113 = sphi 0, %s111
      %s114 = sphi 0, %s113
      %s128 = sphi 0, %s114
      %s134 = sphi 0, %s136
      %s137 = sphi 0, %s134
      %s138 = sphi 0, %s137
      %s154 = sphi 0, %s138
    $region4: #{_forward_impl.1} parent=1 // loop_header_branch
      %17 = sbr.rel (%p15) target = $region8
    $region5: #{_forward_impl.1} parent=1 // loop_body
      %s19 = ssub.s32 %s14, 1
      %s20 = ssub.s32 %s14, 2
      %s21 = sadd.s32 %s14, 1
      %s22 = ssub.s32 %s14, %s21
      %p23 = scmp.eq.s32.totalorder %s22, 0
      %s25 = sadd.s32 %s24, 1
      %s26 = scalar_select %p23, %s24, %s25
      %p29 = pneg %p23
      %p30 = scmp.eq.s32.totalorder %s14, 1
      %p31 = por %p29, %p30
      %p32 = scmp.ne.s32.totalorder %s24, %s27
      %p33 = scmp.eq.s32.totalorder %s14, 0
      %p34 = por %p32, %p33
      %p35 = scmp.ne.s32.totalorder %s24, %s27
      %p36 = scmp.eq.s32.totalorder %s19, 1
      %p37 = por %p35, %p36
      %p38 = scmp.ne.s32.totalorder %s27, %s28
      %p39 = scmp.eq.s32.totalorder %s19, 0
      %p40 = por %p38, %p39
      %p41 = scmp.ne.s32.totalorder %s27, %s28
      %p42 = scmp.eq.s32.totalorder %s20, 1
      %p43 = por %p41, %p42
      %p45 = scmp.ne.s32.totalorder %s28, %s44
      %p46 = scmp.eq.s32.totalorder %s20, 0
      %p47 = por %p45, %p46
      %s49 = sadd.s32 %s48, 1
      %p52 = scmp.eq.s32.totalorder %s14, 1
      %p53 = scmp.ne.s32.totalorder %s48, %s50
      %p54 = scmp.eq.s32.totalorder %s14, 0
      %p55 = por %p53, %p54
      %p56 = scmp.ne.s32.totalorder %s48, %s50
      %p57 = scmp.eq.s32.totalorder %s19, 1
      %p58 = por %p56, %p57
      %p59 = scmp.ne.s32.totalorder %s50, %s51
      %p60 = scmp.eq.s32.totalorder %s19, 0
      %p61 = por %p59, %p60
      %p62 = scmp.ne.s32.totalorder %s50, %s51
      %p63 = scmp.eq.s32.totalorder %s20, 1
      %p64 = por %p62, %p63
      %p66 = scmp.ne.s32.totalorder %s51, %s65
      %p67 = scmp.eq.s32.totalorder %s20, 0
      %p68 = por %p66, %p67
      %s70 = sadd.s32 %s69, 1
      %p73 = scmp.eq.s32.totalorder %s14, 1
      %p74 = scmp.ne.s32.totalorder %s69, %s71
      %p75 = scmp.eq.s32.totalorder %s14, 0
      %p76 = por %p74, %p75
      %p77 = scmp.ne.s32.totalorder %s69, %s71
      %p78 = scmp.eq.s32.totalorder %s19, 1
      %p79 = por %p77, %p78
      %p80 = scmp.ne.s32.totalorder %s71, %s72
      %p81 = scmp.eq.s32.totalorder %s19, 0
      %p82 = por %p80, %p81
      %p83 = scmp.ne.s32.totalorder %s71, %s72
      %p84 = scmp.eq.s32.totalorder %s20, 1
      %p85 = por %p83, %p84
      %p87 = scmp.ne.s32.totalorder %s72, %s86
      %p88 = scmp.eq.s32.totalorder %s20, 0
      %p89 = por %p87, %p88
      %s91 = sadd.s32 %s90, 1
      %p94 = scmp.eq.s32.totalorder %s14, 1
      %p95 = scmp.ne.s32.totalorder %s90, %s92
      %p96 = scmp.eq.s32.totalorder %s14, 0
      %p97 = por %p95, %p96
      %p98 = scmp.ne.s32.totalorder %s90, %s92
      %p99 = scmp.eq.s32.totalorder %s19, 1
      %p100 = por %p98, %p99
      %p101 = scmp.ne.s32.totalorder %s92, %s93
      %p102 = scmp.eq.s32.totalorder %s19, 0
      %p103 = por %p101, %p102
      %p104 = scmp.ne.s32.totalorder %s92, %s93
      %p105 = scmp.eq.s32.totalorder %s20, 1
      %p106 = por %p104, %p105
      %p108 = scmp.ne.s32.totalorder %s93, %s107
      %p109 = scmp.eq.s32.totalorder %s20, 0
      %p110 = por %p108, %p109
      %s112 = sadd.s32 %s111, 1
      %p115 = scmp.eq.s32.totalorder %s14, 1
      %p116 = scmp.ne.s32.totalorder %s111, %s113
      %p117 = scmp.eq.s32.totalorder %s14, 0
      %p118 = por %p116, %p117
      %p119 = scmp.ne.s32.totalorder %s111, %s113
      %p120 = scmp.eq.s32.totalorder %s19, 1
      %p121 = por %p119, %p120
      %p122 = scmp.ne.s32.totalorder %s113, %s114
      %p123 = scmp.eq.s32.totalorder %s19, 0
      %p124 = por %p122, %p123
      %p125 = scmp.ne.s32.totalorder %s113, %s114
      %p126 = scmp.eq.s32.totalorder %s20, 1
      %p127 = por %p125, %p126
      %p129 = scmp.ne.s32.totalorder %s114, %s128
      %p130 = scmp.eq.s32.totalorder %s20, 0
      %p131 = por %p129, %p130
      %s132 = ssub.s32 %s14, %s21
      %p133 = scmp.eq.s32.totalorder %s132, 0
      %s135 = sadd.s32 %s134, 1
      %s136 = scalar_select %p133, %s134, %s135
      %p139 = pneg %p133
      %p140 = scmp.eq.s32.totalorder %s14, 1
      %p141 = por %p139, %p140
      %p142 = scmp.ne.s32.totalorder %s134, %s137
      %p143 = scmp.eq.s32.totalorder %s14, 0
      %p144 = por %p142, %p143
      %p145 = scmp.ne.s32.totalorder %s134, %s137
      %p146 = scmp.eq.s32.totalorder %s19, 1
      %p147 = por %p145, %p146
      %p148 = scmp.ne.s32.totalorder %s137, %s138
      %p149 = scmp.eq.s32.totalorder %s19, 0
      %p150 = por %p148, %p149
      %p151 = scmp.ne.s32.totalorder %s137, %s138
      %p152 = scmp.eq.s32.totalorder %s20, 1
      %p153 = por %p151, %p152
      %p155 = scmp.ne.s32.totalorder %s138, %s154
      %p156 = scmp.eq.s32.totalorder %s20, 0
      %p157 = por %p155, %p156
      %p158 = scmp.le.s32.totalorder 1, %s14
      %p159 = scmp.lt.s32.totalorder %s14, 3
      %p160 = pnand %p158, %p159
      %p161 = pneg %p160
      // Predicated region
      $region9: #{_forward_impl.1} parent=5 // pred_check
        _
      $region10: #{_forward_impl.1} parent=5 // pred_check_branch
        %163 = sbr.rel (%p160) target = $region12
      $region11: #{_forward_impl.1} parent=5 // pred_region
        %s164 = ssub.s32 %s14, 1
        // Predicated region
        $region13: #{_forward_impl.1} parent=11 // pred_check
          %p165 = pneg %p61
        $region14: #{_forward_impl.1} parent=11 // pred_check_branch
          %167 = sbr.rel (%p165) target = $region16
        $region15: #{_forward_impl.1} parent=11 // pred_region
          _
        $region16: #{_forward_impl.1} parent=11 // pred_fallthru
          _
        // Predicated region
        $region17: #{_forward_impl.1} parent=11 // pred_check
          %p168 = pneg %p82
        $region18: #{_forward_impl.1} parent=11 // pred_check_branch
          %170 = sbr.rel (%p168) target = $region20
        $region19: #{_forward_impl.1} parent=11 // pred_region
          _
        $region20: #{_forward_impl.1} parent=11 // pred_fallthru
          _
        // Predicated region
        $region21: #{_forward_impl.1} parent=11 // pred_check
          %p171 = pneg %p103
        $region22: #{_forward_impl.1} parent=11 // pred_check_branch
          %173 = sbr.rel (%p171) target = $region24
        $region23: #{_forward_impl.1} parent=11 // pred_region
          _
        $region24: #{_forward_impl.1} parent=11 // pred_fallthru
          _
        // Predicated region
        $region25: #{_forward_impl.1} parent=11 // pred_check
          %p174 = pneg %p124
        $region26: #{_forward_impl.1} parent=11 // pred_check_branch
          %176 = sbr.rel (%p174) target = $region28
        $region27: #{_forward_impl.1} parent=11 // pred_region
          _
        $region28: #{_forward_impl.1} parent=11 // pred_fallthru
          _
      $region12: #{_forward_impl.1} parent=5 // pred_fallthru
        _
      %p177 = scmp.lt.s32.totalorder %s14, 2
      // Predicated region
      $region29: #{_forward_impl.1} parent=5 // pred_check
        %p178 = pneg %p177
      $region30: #{_forward_impl.1} parent=5 // pred_check_branch
        %180 = sbr.rel (%p178) target = $region32
      $region31: #{_forward_impl.1} parent=5 // pred_region
        // Predicated region
        $region33: #{_forward_impl.1} parent=31 // pred_check
          %p181 = pneg %p34
        $region34: #{_forward_impl.1} parent=31 // pred_check_branch
          %183 = sbr.rel (%p181) target = $region36
        $region35: #{_forward_impl.1} parent=31 // pred_region
          %p184 = scmp.lt.s32.totalorder %s14, 1
          %s185 = scalar_select %p184, %s14, 1
          %s186 = smul.addr %s185, 4
          %s187 = scalar_lea.vmem %s0, %s186
        $region36: #{_forward_impl.1} parent=31 // pred_fallthru
          _
      $region32: #{_forward_impl.1} parent=5 // pred_fallthru
        _
      %p188 = scmp.le.s32.totalorder 1, %s14
      %p189 = scmp.lt.s32.totalorder %s14, 3
      %p190 = pnand %p188, %p189
      %p191 = pneg %p190
      // Predicated region
      $region37: #{_forward_impl.1} parent=5 // pred_check
        _
      $region38: #{_forward_impl.1} parent=5 // pred_check_branch
        %193 = sbr.rel (%p190) target = $region40
      $region39: #{_forward_impl.1} parent=5 // pred_region
        %s194 = ssub.s32 %s14, 1
        %p195 = scmp.lt.s32.totalorder %s19, 1
        %s196 = scalar_select %p195, %s19, 1
        %s197 = smul.addr %s196, 4
        %s198 = scalar_lea.vmem %s0, %s197
        %p199 = pneg %p40
        %p200 = pneg %p37
        %p201 = pneg %p61
        %p202 = pneg %p58
        %p203 = pneg %p82
        %p204 = pneg %p79
        %p205 = pneg %p103
        %p206 = pneg %p100
        %p207 = pneg %p124
        %p208 = pneg %p121
        %p209 = pneg %p150
        %p210 = pneg %p147
        %s211 = sand.u32 %s137, 1
        %s212 = scalar_lea.sflag [#allocation4], %s211
        %s213 = sand.u32 %s137, 1
        %s214 = scalar_lea.vmem [#allocation3], %s213
        %p215 = scmp.lt.s32.totalorder %s19, 1
        %s216 = scalar_select %p215, %s19, 1
        %s217 = smul.addr %s216, 4
        %s218 = scalar_lea.vmem %s0, %s217
        %v220 = vld [vmem:[%s218] sm:$0x7]
        %v221 = vld [vmem:[%s4] sm:$0xff]
        %v222 = vld [vmem:[%s4 + $0x8] sm:$0xff]
        %v223 = vld [vmem:[%s4 + $0x10] sm:$0xff]
        %v224 = vld [vmem:[%s4 + $0x18] sm:$0xff]
        %226 = vset.pattern.permute.xlu0 8
        %227 = vperm.xlu0 %226, %v221
        %v228 = vpop.permute.xlu0 %227
        %231 = vset.pattern.permute.xlu0 8
        %232 = vperm.xlu0 %231, %v222
        %v233 = vpop.permute.xlu0 %232
        %236 = vset.pattern.permute.xlu0 8
        %237 = vperm.xlu0 %236, %v223
        %v238 = vpop.permute.xlu0 %237
        %241 = vset.pattern.permute.xlu0 8
        %242 = vperm.xlu0 %241, %v224
        %v243 = vpop.permute.xlu0 %242
        %v245 = vlaneseq
        %v246 = vshrl.u32 %v245, 7
        %v247 = vsub.s32 0, %v246
        %v248 = vrot.slane %v220, %v247
        %v249 = vmul.f32 %v228, %v248
        %v250 = vmul.f32 %v233, %v248
        %v251 = vmul.f32 %v238, %v248
        %v252 = vmul.f32 %v243, %v248
        %253 = vset.pattern.permute.xlu0 9
        %254 = vperm.xlu0 %253, %v221
        %v255 = vpop.permute.xlu0 %254
        %257 = vset.pattern.permute.xlu0 9
        %258 = vperm.xlu0 %257, %v222
        %v259 = vpop.permute.xlu0 %258
        %261 = vset.pattern.permute.xlu0 9
        %262 = vperm.xlu0 %261, %v223
        %v263 = vpop.permute.xlu0 %262
        %265 = vset.pattern.permute.xlu0 9
        %266 = vperm.xlu0 %265, %v224
        %v267 = vpop.permute.xlu0 %266
        %v269 = vlaneseq
        %v270 = vshrl.u32 %v269, 7
        %v271 = vsub.s32 1, %v270
        %v272 = vrot.slane %v220, %v271
        %v273 = vmul.f32 %v255, %v272
        %v274 = vmul.f32 %v259, %v272
        %v275 = vmul.f32 %v263, %v272
        %v276 = vmul.f32 %v267, %v272
        %v277 = vadd.f32 %v249, %v273
        %v278 = vadd.f32 %v250, %v274
        %v279 = vadd.f32 %v251, %v275
        %v280 = vadd.f32 %v252, %v276
        %281 = vset.pattern.permute.xlu0 10
        %282 = vperm.xlu0 %281, %v221
        %v283 = vpop.permute.xlu0 %282
        %285 = vset.pattern.permute.xlu0 10
        %286 = vperm.xlu0 %285, %v222
        %v287 = vpop.permute.xlu0 %286
        %289 = vset.pattern.permute.xlu0 10
        %290 = vperm.xlu0 %289, %v223
        %v291 = vpop.permute.xlu0 %290
        %293 = vset.pattern.permute.xlu0 10
        %294 = vperm.xlu0 %293, %v224
        %v295 = vpop.permute.xlu0 %294
        %v297 = vlaneseq
        %v298 = vshrl.u32 %v297, 7
        %v299 = vsub.s32 2, %v298
        %v300 = vrot.slane %v220, %v299
        %v301 = vmul.f32 %v283, %v300
        %v302 = vmul.f32 %v287, %v300
        %v303 = vmul.f32 %v291, %v300
        %v304 = vmul.f32 %v295, %v300
        %v305 = vadd.f32 %v277, %v301
        %v306 = vadd.f32 %v278, %v302
        %v307 = vadd.f32 %v279, %v303
        %v308 = vadd.f32 %v280, %v304
        %v309 = vand.u32 2147483647, %v305
        %vm310 = vcmp.le.f32.partialorder %v309, 0.7853982
        %vm311 = vcmp.lt.s32.totalorder %v305, 0
        %v312 = vand.u32 %v305, 2139095040
        %v313 = vshrl.u32 %v312, 23
        %v314 = vsub.s32 %v313, 127
        %v315 = vand.u32 2147483647, %v305
        %v316 = vand.u32 %v315, 8388607
        %v317 = vor.u32 %v316, 8388608
        %v318 = vsub.s32 0, %v317
        %v319 = vadd.s32 %v314, 1
        %vm320 = vcmp.gt.s32.totalorder %v319, 0
        %v321 = vsel %vm320, %v319, 0
        %v322 = vshrl.u32 %v321, 5
        %v323 = vand.u32 %v321, 31
        %v324 = vsub.s32 32, %v323
        %v325 = vshrl.u32 683565275, %v324
        %v326 = vshll.u32 683565275, %v323
        %v327 = vshrl.u32 2475754826, %v324
        %v328 = vor.u32 %v326, %v327
        %v329 = vshll.u32 2475754826, %v323
        %v330 = vshrl.u32 2131351028, %v324
        %v331 = vor.u32 %v329, %v330
        %v332 = vshll.u32 2131351028, %v323
        %v333 = vshrl.u32 2102212464, %v324
        %v334 = vor.u32 %v332, %v333
        %v335 = vshll.u32 2102212464, %v323
        %v336 = vshrl.u32 920167782, %v324
        %v337 = vor.u32 %v335, %v336
        %v338 = vshll.u32 920167782, %v323
        %v339 = vshrl.u32 1326507024, %v324
        %v340 = vor.u32 %v338, %v339
        %vm341 = vcmp.lt.s32.totalorder %v322, 1
        %vm342 = vcmp.lt.s32.totalorder %v322, 2
        %vm343 = vcmp.lt.s32.totalorder %v322, 3
        %vm344 = vcmp.lt.s32.totalorder %v322, 4
        %v345 = vsel %vm341, %v325, %v328
        %v346 = vsel %vm344, %v334, 2102212464
        %v347 = vsel %vm343, %v331, %v346
        %v348 = vsel %vm342, %v345, %v347
        %v349 = vsel %vm341, %v328, %v331
        %v350 = vsel %vm344, %v337, 920167782
        %v351 = vsel %vm343, %v334, %v350
        %v352 = vsel %vm342, %v349, %v351
        %v353 = vsel %vm341, %v331, %v334
        %v354 = vsel %vm344, %v340, 1326507024
        %v355 = vsel %vm343, %v337, %v354
        %v356 = vsel %vm342, %v353, %v355
        %v357 = vshll.u32 %v317, 8
        %v358 = vmul.u32.u64.compose %v357, %v356
        %v359 = vextract.low.u32 %v358
        %v360 = vextract.high.u32 %v358
        %v361 = vmul.u32.u64.compose %v357, %v352
        %v362 = vextract.low.u32 %v361
        %v363 = vextract.high.u32 %v361
        %v364 = vmul.u32 %v357, %v348
        %v365 = vadd.s32 %v360, %v362
        %vm366 = vc.u32 %v360, %v362
        %v367 = vadd.s32 %v363, 1
        %v368 = vsel %vm366, %v367, %v363
        %v369 = vadd.s32 %v364, %v368
        %v370 = vadd.s32 %v369, 536870912
        %v371 = vshrl.u32 %v370, 30
        %v372 = vshll.u32 %v371, 30
        %v373 = vsub.s32 %v369, %v372
        %vm374 = vcmp.lt.s32.totalorder %v373, 0
        %v375 = vsub.s32 0, %v373
        %v376 = vsel %vm374, %v375, %v373
        %v377 = vclz %v376
        %v378 = vsub.s32 %v377, 2
        %vm379 = vcmp.gt.s32.totalorder 0, %v378
        %v380 = vsel %vm379, 0, %v378
        %v381 = vsub.s32 32, %v380
        %v382 = vshll.u32 %v373, %v380
        %v383 = vshrl.u32 %v365, %v381
        %v384 = vor.u32 %v382, %v383
        %v385 = vsub.s32 4294967266, %v380
        %v386 = vadd.s32 %v385, 127
        %v387 = vshll.u32 %v386, 23
        %v388 = vor.u32 4788187, %v387
        %v389 = vand.u32 2147483647, %v388
        %v391 = vcvt.s32.f32 %v384
        %v392 = vmul.f32 %v391, %v389
        %v393 = vxor.u32 %v392, 2147483648
        %v394 = vsel %vm311, %v393, %v392
        %v395 = vsub.s32 4, %v371
        %v396 = vsel %vm311, %v395, %v371
        %v397 = vsel %vm310, %v305, %v394
        %v398 = vsel %vm310, 0, %v396
        %v399 = vcosq.f32.pop %v397
        %v400 = vsinq.f32.pop %v397
        %vm401 = vweird.f32 %v305
        %v402 = vadd.s32 %v398, 3
        %v403 = vand.u32 %v402, 3
        %vm404 = vcmp.lt.s32.totalorder %v403, 2
        %vm405 = vcmp.eq.s32.totalorder %v403, 0
        %v406 = vxor.u32 %v400, 2147483648
        %v407 = vsel %vm405, %v399, %v406
        %vm408 = vcmp.eq.s32.totalorder %v403, 2
        %v409 = vxor.u32 %v399, 2147483648
        %v410 = vsel %vm408, %v409, %v400
        %v411 = vsel %vm404, %v407, %v410
        %v412 = vsel %vm401, nan, %v411
        %v413 = vand.u32 2147483647, %v306
        %vm414 = vcmp.le.f32.partialorder %v413, 0.7853982
        %vm415 = vcmp.lt.s32.totalorder %v306, 0
        %v416 = vand.u32 %v306, 2139095040
        %v417 = vshrl.u32 %v416, 23
        %v418 = vsub.s32 %v417, 127
        %v419 = vand.u32 2147483647, %v306
        %v420 = vand.u32 %v419, 8388607
        %v421 = vor.u32 %v420, 8388608
        %v422 = vsub.s32 0, %v421
        %v423 = vadd.s32 %v418, 1
        %vm424 = vcmp.gt.s32.totalorder %v423, 0
        %v425 = vsel %vm424, %v423, 0
        %v426 = vshrl.u32 %v425, 5
        %v427 = vand.u32 %v425, 31
        %v428 = vsub.s32 32, %v427
        %v429 = vshrl.u32 683565275, %v428
        %v430 = vshll.u32 683565275, %v427
        %v431 = vshrl.u32 2475754826, %v428
        %v432 = vor.u32 %v430, %v431
        %v433 = vshll.u32 2475754826, %v427
        %v434 = vshrl.u32 2131351028, %v428
        %v435 = vor.u32 %v433, %v434
        %v436 = vshll.u32 2131351028, %v427
        %v437 = vshrl.u32 2102212464, %v428
        %v438 = vor.u32 %v436, %v437
        %v439 = vshll.u32 2102212464, %v427
        %v440 = vshrl.u32 920167782, %v428
        %v441 = vor.u32 %v439, %v440
        %v442 = vshll.u32 920167782, %v427
        %v443 = vshrl.u32 1326507024, %v428
        %v444 = vor.u32 %v442, %v443
        %vm445 = vcmp.lt.s32.totalorder %v426, 1
        %vm446 = vcmp.lt.s32.totalorder %v426, 2
        %vm447 = vcmp.lt.s32.totalorder %v426, 3
        %vm448 = vcmp.lt.s32.totalorder %v426, 4
        %v449 = vsel %vm445, %v429, %v432
        %v450 = vsel %vm448, %v438, 2102212464
        %v451 = vsel %vm447, %v435, %v450
        %v452 = vsel %vm446, %v449, %v451
        %v453 = vsel %vm445, %v432, %v435
        %v454 = vsel %vm448, %v441, 920167782
        %v455 = vsel %vm447, %v438, %v454
        %v456 = vsel %vm446, %v453, %v455
        %v457 = vsel %vm445, %v435, %v438
        %v458 = vsel %vm448, %v444, 1326507024
        %v459 = vsel %vm447, %v441, %v458
        %v460 = vsel %vm446, %v457, %v459
        %v461 = vshll.u32 %v421, 8
        %v462 = vmul.u32.u64.compose %v461, %v460
        %v463 = vextract.low.u32 %v462
        %v464 = vextract.high.u32 %v462
        %v465 = vmul.u32.u64.compose %v461, %v456
        %v466 = vextract.low.u32 %v465
        %v467 = vextract.high.u32 %v465
        %v468 = vmul.u32 %v461, %v452
        %v469 = vadd.s32 %v464, %v466
        %vm470 = vc.u32 %v464, %v466
        %v471 = vadd.s32 %v467, 1
        %v472 = vsel %vm470, %v471, %v467
        %v473 = vadd.s32 %v468, %v472
        %v474 = vadd.s32 %v473, 536870912
        %v475 = vshrl.u32 %v474, 30
        %v476 = vshll.u32 %v475, 30
        %v477 = vsub.s32 %v473, %v476
        %vm478 = vcmp.lt.s32.totalorder %v477, 0
        %v479 = vsub.s32 0, %v477
        %v480 = vsel %vm478, %v479, %v477
        %v481 = vclz %v480
        %v482 = vsub.s32 %v481, 2
        %vm483 = vcmp.gt.s32.totalorder 0, %v482
        %v484 = vsel %vm483, 0, %v482
        %v485 = vsub.s32 32, %v484
        %v486 = vshll.u32 %v477, %v484
        %v487 = vshrl.u32 %v469, %v485
        %v488 = vor.u32 %v486, %v487
        %v489 = vsub.s32 4294967266, %v484
        %v490 = vadd.s32 %v489, 127
        %v491 = vshll.u32 %v490, 23
        %v492 = vor.u32 4788187, %v491
        %v493 = vand.u32 2147483647, %v492
        %v495 = vcvt.s32.f32 %v488
        %v496 = vmul.f32 %v495, %v493
        %v497 = vxor.u32 %v496, 2147483648
        %v498 = vsel %vm415, %v497, %v496
        %v499 = vsub.s32 4, %v475
        %v500 = vsel %vm415, %v499, %v475
        %v501 = vsel %vm414, %v306, %v498
        %v502 = vsel %vm414, 0, %v500
        %v503 = vcosq.f32.pop %v501
        %v504 = vsinq.f32.pop %v501
        %vm505 = vweird.f32 %v306
        %v506 = vadd.s32 %v502, 3
        %v507 = vand.u32 %v506, 3
        %vm508 = vcmp.lt.s32.totalorder %v507, 2
        %vm509 = vcmp.eq.s32.totalorder %v507, 0
        %v510 = vxor.u32 %v504, 2147483648
        %v511 = vsel %vm509, %v503, %v510
        %vm512 = vcmp.eq.s32.totalorder %v507, 2
        %v513 = vxor.u32 %v503, 2147483648
        %v514 = vsel %vm512, %v513, %v504
        %v515 = vsel %vm508, %v511, %v514
        %v516 = vsel %vm505, nan, %v515
        %v517 = vand.u32 2147483647, %v307
        %vm518 = vcmp.le.f32.partialorder %v517, 0.7853982
        %vm519 = vcmp.lt.s32.totalorder %v307, 0
        %v520 = vand.u32 %v307, 2139095040
        %v521 = vshrl.u32 %v520, 23
        %v522 = vsub.s32 %v521, 127
        %v523 = vand.u32 2147483647, %v307
        %v524 = vand.u32 %v523, 8388607
        %v525 = vor.u32 %v524, 8388608
        %v526 = vsub.s32 0, %v525
        %v527 = vadd.s32 %v522, 1
        %vm528 = vcmp.gt.s32.totalorder %v527, 0
        %v529 = vsel %vm528, %v527, 0
        %v530 = vshrl.u32 %v529, 5
        %v531 = vand.u32 %v529, 31
        %v532 = vsub.s32 32, %v531
        %v533 = vshrl.u32 683565275, %v532
        %v534 = vshll.u32 683565275, %v531
        %v535 = vshrl.u32 2475754826, %v532
        %v536 = vor.u32 %v534, %v535
        %v537 = vshll.u32 2475754826, %v531
        %v538 = vshrl.u32 2131351028, %v532
        %v539 = vor.u32 %v537, %v538
        %v540 = vshll.u32 2131351028, %v531
        %v541 = vshrl.u32 2102212464, %v532
        %v542 = vor.u32 %v540, %v541
        %v543 = vshll.u32 2102212464, %v531
        %v544 = vshrl.u32 920167782, %v532
        %v545 = vor.u32 %v543, %v544
        %v546 = vshll.u32 920167782, %v531
        %v547 = vshrl.u32 1326507024, %v532
        %v548 = vor.u32 %v546, %v547
        %vm549 = vcmp.lt.s32.totalorder %v530, 1
        %vm550 = vcmp.lt.s32.totalorder %v530, 2
        %vm551 = vcmp.lt.s32.totalorder %v530, 3
        %vm552 = vcmp.lt.s32.totalorder %v530, 4
        %v553 = vsel %vm549, %v533, %v536
        %v554 = vsel %vm552, %v542, 2102212464
        %v555 = vsel %vm551, %v539, %v554
        %v556 = vsel %vm550, %v553, %v555
        %v557 = vsel %vm549, %v536, %v539
        %v558 = vsel %vm552, %v545, 920167782
        %v559 = vsel %vm551, %v542, %v558
        %v560 = vsel %vm550, %v557, %v559
        %v561 = vsel %vm549, %v539, %v542
        %v562 = vsel %vm552, %v548, 1326507024
        %v563 = vsel %vm551, %v545, %v562
        %v564 = vsel %vm550, %v561, %v563
        %v565 = vshll.u32 %v525, 8
        %v566 = vmul.u32.u64.compose %v565, %v564
        %v567 = vextract.low.u32 %v566
        %v568 = vextract.high.u32 %v566
        %v569 = vmul.u32.u64.compose %v565, %v560
        %v570 = vextract.low.u32 %v569
        %v571 = vextract.high.u32 %v569
        %v572 = vmul.u32 %v565, %v556
        %v573 = vadd.s32 %v568, %v570
        %vm574 = vc.u32 %v568, %v570
        %v575 = vadd.s32 %v571, 1
        %v576 = vsel %vm574, %v575, %v571
        %v577 = vadd.s32 %v572, %v576
        %v578 = vadd.s32 %v577, 536870912
        %v579 = vshrl.u32 %v578, 30
        %v580 = vshll.u32 %v579, 30
        %v581 = vsub.s32 %v577, %v580
        %vm582 = vcmp.lt.s32.totalorder %v581, 0
        %v583 = vsub.s32 0, %v581
        %v584 = vsel %vm582, %v583, %v581
        %v585 = vclz %v584
        %v586 = vsub.s32 %v585, 2
        %vm587 = vcmp.gt.s32.totalorder 0, %v586
        %v588 = vsel %vm587, 0, %v586
        %v589 = vsub.s32 32, %v588
        %v590 = vshll.u32 %v581, %v588
        %v591 = vshrl.u32 %v573, %v589
        %v592 = vor.u32 %v590, %v591
        %v593 = vsub.s32 4294967266, %v588
        %v594 = vadd.s32 %v593, 127
        %v595 = vshll.u32 %v594, 23
        %v596 = vor.u32 4788187, %v595
        %v597 = vand.u32 2147483647, %v596
        %v599 = vcvt.s32.f32 %v592
        %v600 = vmul.f32 %v599, %v597
        %v601 = vxor.u32 %v600, 2147483648
        %v602 = vsel %vm519, %v601, %v600
        %v603 = vsub.s32 4, %v579
        %v604 = vsel %vm519, %v603, %v579
        %v605 = vsel %vm518, %v307, %v602
        %v606 = vsel %vm518, 0, %v604
        %v607 = vcosq.f32.pop %v605
        %v608 = vsinq.f32.pop %v605
        %vm609 = vweird.f32 %v307
        %v610 = vadd.s32 %v606, 3
        %v611 = vand.u32 %v610, 3
        %vm612 = vcmp.lt.s32.totalorder %v611, 2
        %vm613 = vcmp.eq.s32.totalorder %v611, 0
        %v614 = vxor.u32 %v608, 2147483648
        %v615 = vsel %vm613, %v607, %v614
        %vm616 = vcmp.eq.s32.totalorder %v611, 2
        %v617 = vxor.u32 %v607, 2147483648
        %v618 = vsel %vm616, %v617, %v608
        %v619 = vsel %vm612, %v615, %v618
        %v620 = vsel %vm609, nan, %v619
        %v621 = vand.u32 2147483647, %v308
        %vm622 = vcmp.le.f32.partialorder %v621, 0.7853982
        %vm623 = vcmp.lt.s32.totalorder %v308, 0
        %v624 = vand.u32 %v308, 2139095040
        %v625 = vshrl.u32 %v624, 23
        %v626 = vsub.s32 %v625, 127
        %v627 = vand.u32 2147483647, %v308
        %v628 = vand.u32 %v627, 8388607
        %v629 = vor.u32 %v628, 8388608
        %v630 = vsub.s32 0, %v629
        %v631 = vadd.s32 %v626, 1
        %vm632 = vcmp.gt.s32.totalorder %v631, 0
        %v633 = vsel %vm632, %v631, 0
        %v634 = vshrl.u32 %v633, 5
        %v635 = vand.u32 %v633, 31
        %v636 = vsub.s32 32, %v635
        %v637 = vshrl.u32 683565275, %v636
        %v638 = vshll.u32 683565275, %v635
        %v639 = vshrl.u32 2475754826, %v636
        %v640 = vor.u32 %v638, %v639
        %v641 = vshll.u32 2475754826, %v635
        %v642 = vshrl.u32 2131351028, %v636
        %v643 = vor.u32 %v641, %v642
        %v644 = vshll.u32 2131351028, %v635
        %v645 = vshrl.u32 2102212464, %v636
        %v646 = vor.u32 %v644, %v645
        %v647 = vshll.u32 2102212464, %v635
        %v648 = vshrl.u32 920167782, %v636
        %v649 = vor.u32 %v647, %v648
        %v650 = vshll.u32 920167782, %v635
        %v651 = vshrl.u32 1326507024, %v636
        %v652 = vor.u32 %v650, %v651
        %vm653 = vcmp.lt.s32.totalorder %v634, 1
        %vm654 = vcmp.lt.s32.totalorder %v634, 2
        %vm655 = vcmp.lt.s32.totalorder %v634, 3
        %vm656 = vcmp.lt.s32.totalorder %v634, 4
        %v657 = vsel %vm653, %v637, %v640
        %v658 = vsel %vm656, %v646, 2102212464
        %v659 = vsel %vm655, %v643, %v658
        %v660 = vsel %vm654, %v657, %v659
        %v661 = vsel %vm653, %v640, %v643
        %v662 = vsel %vm656, %v649, 920167782
        %v663 = vsel %vm655, %v646, %v662
        %v664 = vsel %vm654, %v661, %v663
        %v665 = vsel %vm653, %v643, %v646
        %v666 = vsel %vm656, %v652, 1326507024
        %v667 = vsel %vm655, %v649, %v666
        %v668 = vsel %vm654, %v665, %v667
        %v669 = vshll.u32 %v629, 8
        %v670 = vmul.u32.u64.compose %v669, %v668
        %v671 = vextract.low.u32 %v670
        %v672 = vextract.high.u32 %v670
        %v673 = vmul.u32.u64.compose %v669, %v664
        %v674 = vextract.low.u32 %v673
        %v675 = vextract.high.u32 %v673
        %v676 = vmul.u32 %v669, %v660
        %v677 = vadd.s32 %v672, %v674
        %vm678 = vc.u32 %v672, %v674
        %v679 = vadd.s32 %v675, 1
        %v680 = vsel %vm678, %v679, %v675
        %v681 = vadd.s32 %v676, %v680
        %v682 = vadd.s32 %v681, 536870912
        %v683 = vshrl.u32 %v682, 30
        %v684 = vshll.u32 %v683, 30
        %v685 = vsub.s32 %v681, %v684
        %vm686 = vcmp.lt.s32.totalorder %v685, 0
        %v687 = vsub.s32 0, %v685
        %v688 = vsel %vm686, %v687, %v685
        %v689 = vclz %v688
        %v690 = vsub.s32 %v689, 2
        %vm691 = vcmp.gt.s32.totalorder 0, %v690
        %v692 = vsel %vm691, 0, %v690
        %v693 = vsub.s32 32, %v692
        %v694 = vshll.u32 %v685, %v692
        %v695 = vshrl.u32 %v677, %v693
        %v696 = vor.u32 %v694, %v695
        %v697 = vsub.s32 4294967266, %v692
        %v698 = vadd.s32 %v697, 127
        %v699 = vshll.u32 %v698, 23
        %v700 = vor.u32 4788187, %v699
        %v701 = vand.u32 2147483647, %v700
        %v703 = vcvt.s32.f32 %v696
        %v704 = vmul.f32 %v703, %v701
        %v705 = vxor.u32 %v704, 2147483648
        %v706 = vsel %vm623, %v705, %v704
        %v707 = vsub.s32 4, %v683
        %v708 = vsel %vm623, %v707, %v683
        %v709 = vsel %vm622, %v308, %v706
        %v710 = vsel %vm622, 0, %v708
        %v711 = vcosq.f32.pop %v709
        %v712 = vsinq.f32.pop %v709
        %vm713 = vweird.f32 %v308
        %v714 = vadd.s32 %v710, 3
        %v715 = vand.u32 %v714, 3
        %vm716 = vcmp.lt.s32.totalorder %v715, 2
        %vm717 = vcmp.eq.s32.totalorder %v715, 0
        %v718 = vxor.u32 %v712, 2147483648
        %v719 = vsel %vm717, %v711, %v718
        %vm720 = vcmp.eq.s32.totalorder %v715, 2
        %v721 = vxor.u32 %v711, 2147483648
        %v722 = vsel %vm720, %v721, %v712
        %v723 = vsel %vm716, %v719, %v722
        %v724 = vsel %vm713, nan, %v723
        %v725 = vpack.c.bf16 %v516, %v412
        %v726 = vpack.c.bf16 %v724, %v620
        %v729 = vunpack.c.l.b16 %v725
        %v730 = vunpack.c.h.b16 %v725
        %v731 = vunpack.c.l.b16 %v726
        %v732 = vunpack.c.h.b16 %v726
        %v733 = vpack.c.b16 %v729, %v729
        %v734 = vpack.c.b16 %v730, %v730
        %v735 = vpack.c.b16 %v731, %v731
        %v736 = vpack.c.b16 %v732, %v732
        %741 = vst [vmem:[#allocation2] sm:$0xf] %v733
        %742 = vst [vmem:[#allocation2 + $0x4] sm:$0xf] %v734
        %743 = vst [vmem:[#allocation2 + $0x8] sm:$0xf] %v735
        %744 = vst [vmem:[#allocation2 + $0xc] sm:$0xf] %v736
        %v745 = vand.u32 2147483647, %v305
        %vm746 = vcmp.le.f32.partialorder %v745, 0.7853982
        %vm747 = vcmp.lt.s32.totalorder %v305, 0
        %v748 = vand.u32 %v305, 2139095040
        %v749 = vshrl.u32 %v748, 23
        %v750 = vsub.s32 %v749, 127
        %v751 = vand.u32 2147483647, %v305
        %v752 = vand.u32 %v751, 8388607
        %v753 = vor.u32 %v752, 8388608
        %v754 = vsub.s32 0, %v753
        %v755 = vadd.s32 %v750, 1
        %vm756 = vcmp.gt.s32.totalorder %v755, 0
        %v757 = vsel %vm756, %v755, 0
        %v758 = vshrl.u32 %v757, 5
        %v759 = vand.u32 %v757, 31
        %v760 = vsub.s32 32, %v759
        %v761 = vshrl.u32 683565275, %v760
        %v762 = vshll.u32 683565275, %v759
        %v763 = vshrl.u32 2475754826, %v760
        %v764 = vor.u32 %v762, %v763
        %v765 = vshll.u32 2475754826, %v759
        %v766 = vshrl.u32 2131351028, %v760
        %v767 = vor.u32 %v765, %v766
        %v768 = vshll.u32 2131351028, %v759
        %v769 = vshrl.u32 2102212464, %v760
        %v770 = vor.u32 %v768, %v769
        %v771 = vshll.u32 2102212464, %v759
        %v772 = vshrl.u32 920167782, %v760
        %v773 = vor.u32 %v771, %v772
        %v774 = vshll.u32 920167782, %v759
        %v775 = vshrl.u32 1326507024, %v760
        %v776 = vor.u32 %v774, %v775
        %vm777 = vcmp.lt.s32.totalorder %v758, 1
        %vm778 = vcmp.lt.s32.totalorder %v758, 2
        %vm779 = vcmp.lt.s32.totalorder %v758, 3
        %vm780 = vcmp.lt.s32.totalorder %v758, 4
        %v781 = vsel %vm777, %v761, %v764
        %v782 = vsel %vm780, %v770, 2102212464
        %v783 = vsel %vm779, %v767, %v782
        %v784 = vsel %vm778, %v781, %v783
        %v785 = vsel %vm777, %v764, %v767
        %v786 = vsel %vm780, %v773, 920167782
        %v787 = vsel %vm779, %v770, %v786
        %v788 = vsel %vm778, %v785, %v787
        %v789 = vsel %vm777, %v767, %v770
        %v790 = vsel %vm780, %v776, 1326507024
        %v791 = vsel %vm779, %v773, %v790
        %v792 = vsel %vm778, %v789, %v791
        %v793 = vshll.u32 %v753, 8
        %v794 = vmul.u32.u64.compose %v793, %v792
        %v795 = vextract.low.u32 %v794
        %v796 = vextract.high.u32 %v794
        %v797 = vmul.u32.u64.compose %v793, %v788
        %v798 = vextract.low.u32 %v797
        %v799 = vextract.high.u32 %v797
        %v800 = vmul.u32 %v793, %v784
        %v801 = vadd.s32 %v796, %v798
        %vm802 = vc.u32 %v796, %v798
        %v803 = vadd.s32 %v799, 1
        %v804 = vsel %vm802, %v803, %v799
        %v805 = vadd.s32 %v800, %v804
        %v806 = vadd.s32 %v805, 536870912
        %v807 = vshrl.u32 %v806, 30
        %v808 = vshll.u32 %v807, 30
        %v809 = vsub.s32 %v805, %v808
        %vm810 = vcmp.lt.s32.totalorder %v809, 0
        %v811 = vsub.s32 0, %v809
        %v812 = vsel %vm810, %v811, %v809
        %v813 = vclz %v812
        %v814 = vsub.s32 %v813, 2
        %vm815 = vcmp.gt.s32.totalorder 0, %v814
        %v816 = vsel %vm815, 0, %v814
        %v817 = vsub.s32 32, %v816
        %v818 = vshll.u32 %v809, %v816
        %v819 = vshrl.u32 %v801, %v817
        %v820 = vor.u32 %v818, %v819
        %v821 = vsub.s32 4294967266, %v816
        %v822 = vadd.s32 %v821, 127
        %v823 = vshll.u32 %v822, 23
        %v824 = vor.u32 4788187, %v823
        %v825 = vand.u32 2147483647, %v824
        %v827 = vcvt.s32.f32 %v820
        %v828 = vmul.f32 %v827, %v825
        %v829 = vxor.u32 %v828, 2147483648
        %v830 = vsel %vm747, %v829, %v828
        %v831 = vsub.s32 4, %v807
        %v832 = vsel %vm747, %v831, %v807
        %v833 = vsel %vm746, %v305, %v830
        %v834 = vsel %vm746, 0, %v832
        %v835 = vcosq.f32.pop %v833
        %v836 = vsinq.f32.pop %v833
        %vm837 = vweird.f32 %v305
        %v838 = vand.u32 %v834, 3
        %vm839 = vcmp.lt.s32.totalorder %v838, 2
        %vm840 = vcmp.eq.s32.totalorder %v838, 0
        %v841 = vxor.u32 %v836, 2147483648
        %v842 = vsel %vm840, %v835, %v841
        %vm843 = vcmp.eq.s32.totalorder %v838, 2
        %v844 = vxor.u32 %v835, 2147483648
        %v845 = vsel %vm843, %v844, %v836
        %v846 = vsel %vm839, %v842, %v845
        %v847 = vsel %vm837, nan, %v846
        %v848 = vand.u32 2147483647, %v306
        %vm849 = vcmp.le.f32.partialorder %v848, 0.7853982
        %vm850 = vcmp.lt.s32.totalorder %v306, 0
        %v851 = vand.u32 %v306, 2139095040
        %v852 = vshrl.u32 %v851, 23
        %v853 = vsub.s32 %v852, 127
        %v854 = vand.u32 2147483647, %v306
        %v855 = vand.u32 %v854, 8388607
        %v856 = vor.u32 %v855, 8388608
        %v857 = vsub.s32 0, %v856
        %v858 = vadd.s32 %v853, 1
        %vm859 = vcmp.gt.s32.totalorder %v858, 0
        %v860 = vsel %vm859, %v858, 0
        %v861 = vshrl.u32 %v860, 5
        %v862 = vand.u32 %v860, 31
        %v863 = vsub.s32 32, %v862
        %v864 = vshrl.u32 683565275, %v863
        %v865 = vshll.u32 683565275, %v862
        %v866 = vshrl.u32 2475754826, %v863
        %v867 = vor.u32 %v865, %v866
        %v868 = vshll.u32 2475754826, %v862
        %v869 = vshrl.u32 2131351028, %v863
        %v870 = vor.u32 %v868, %v869
        %v871 = vshll.u32 2131351028, %v862
        %v872 = vshrl.u32 2102212464, %v863
        %v873 = vor.u32 %v871, %v872
        %v874 = vshll.u32 2102212464, %v862
        %v875 = vshrl.u32 920167782, %v863
        %v876 = vor.u32 %v874, %v875
        %v877 = vshll.u32 920167782, %v862
        %v878 = vshrl.u32 1326507024, %v863
        %v879 = vor.u32 %v877, %v878
        %vm880 = vcmp.lt.s32.totalorder %v861, 1
        %vm881 = vcmp.lt.s32.totalorder %v861, 2
        %vm882 = vcmp.lt.s32.totalorder %v861, 3
        %vm883 = vcmp.lt.s32.totalorder %v861, 4
        %v884 = vsel %vm880, %v864, %v867
        %v885 = vsel %vm883, %v873, 2102212464
        %v886 = vsel %vm882, %v870, %v885
        %v887 = vsel %vm881, %v884, %v886
        %v888 = vsel %vm880, %v867, %v870
        %v889 = vsel %vm883, %v876, 920167782
        %v890 = vsel %vm882, %v873, %v889
        %v891 = vsel %vm881, %v888, %v890
        %v892 = vsel %vm880, %v870, %v873
        %v893 = vsel %vm883, %v879, 1326507024
        %v894 = vsel %vm882, %v876, %v893
        %v895 = vsel %vm881, %v892, %v894
        %v896 = vshll.u32 %v856, 8
        %v897 = vmul.u32.u64.compose %v896, %v895
        %v898 = vextract.low.u32 %v897
        %v899 = vextract.high.u32 %v897
        %v900 = vmul.u32.u64.compose %v896, %v891
        %v901 = vextract.low.u32 %v900
        %v902 = vextract.high.u32 %v900
        %v903 = vmul.u32 %v896, %v887
        %v904 = vadd.s32 %v899, %v901
        %vm905 = vc.u32 %v899, %v901
        %v906 = vadd.s32 %v902, 1
        %v907 = vsel %vm905, %v906, %v902
        %v908 = vadd.s32 %v903, %v907
        %v909 = vadd.s32 %v908, 536870912
        %v910 = vshrl.u32 %v909, 30
        %v911 = vshll.u32 %v910, 30
        %v912 = vsub.s32 %v908, %v911
        %vm913 = vcmp.lt.s32.totalorder %v912, 0
        %v914 = vsub.s32 0, %v912
        %v915 = vsel %vm913, %v914, %v912
        %v916 = vclz %v915
        %v917 = vsub.s32 %v916, 2
        %vm918 = vcmp.gt.s32.totalorder 0, %v917
        %v919 = vsel %vm918, 0, %v917
        %v920 = vsub.s32 32, %v919
        %v921 = vshll.u32 %v912, %v919
        %v922 = vshrl.u32 %v904, %v920
        %v923 = vor.u32 %v921, %v922
        %v924 = vsub.s32 4294967266, %v919
        %v925 = vadd.s32 %v924, 127
        %v926 = vshll.u32 %v925, 23
        %v927 = vor.u32 4788187, %v926
        %v928 = vand.u32 2147483647, %v927
        %v930 = vcvt.s32.f32 %v923
        %v931 = vmul.f32 %v930, %v928
        %v932 = vxor.u32 %v931, 2147483648
        %v933 = vsel %vm850, %v932, %v931
        %v934 = vsub.s32 4, %v910
        %v935 = vsel %vm850, %v934, %v910
        %v936 = vsel %vm849, %v306, %v933
        %v937 = vsel %vm849, 0, %v935
        %v938 = vcosq.f32.pop %v936
        %v939 = vsinq.f32.pop %v936
        %vm940 = vweird.f32 %v306
        %v941 = vand.u32 %v937, 3
        %vm942 = vcmp.lt.s32.totalorder %v941, 2
        %vm943 = vcmp.eq.s32.totalorder %v941, 0
        %v944 = vxor.u32 %v939, 2147483648
        %v945 = vsel %vm943, %v938, %v944
        %vm946 = vcmp.eq.s32.totalorder %v941, 2
        %v947 = vxor.u32 %v938, 2147483648
        %v948 = vsel %vm946, %v947, %v939
        %v949 = vsel %vm942, %v945, %v948
        %v950 = vsel %vm940, nan, %v949
        %v951 = vand.u32 2147483647, %v307
        %vm952 = vcmp.le.f32.partialorder %v951, 0.7853982
        %vm953 = vcmp.lt.s32.totalorder %v307, 0
        %v954 = vand.u32 %v307, 2139095040
        %v955 = vshrl.u32 %v954, 23
        %v956 = vsub.s32 %v955, 127
        %v957 = vand.u32 2147483647, %v307
        %v958 = vand.u32 %v957, 8388607
        %v959 = vor.u32 %v958, 8388608
        %v960 = vsub.s32 0, %v959
        %v961 = vadd.s32 %v956, 1
        %vm962 = vcmp.gt.s32.totalorder %v961, 0
        %v963 = vsel %vm962, %v961, 0
        %v964 = vshrl.u32 %v963, 5
        %v965 = vand.u32 %v963, 31
        %v966 = vsub.s32 32, %v965
        %v967 = vshrl.u32 683565275, %v966
        %v968 = vshll.u32 683565275, %v965
        %v969 = vshrl.u32 2475754826, %v966
        %v970 = vor.u32 %v968, %v969
        %v971 = vshll.u32 2475754826, %v965
        %v972 = vshrl.u32 2131351028, %v966
        %v973 = vor.u32 %v971, %v972
        %v974 = vshll.u32 2131351028, %v965
        %v975 = vshrl.u32 2102212464, %v966
        %v976 = vor.u32 %v974, %v975
        %v977 = vshll.u32 2102212464, %v965
        %v978 = vshrl.u32 920167782, %v966
        %v979 = vor.u32 %v977, %v978
        %v980 = vshll.u32 920167782, %v965
        %v981 = vshrl.u32 1326507024, %v966
        %v982 = vor.u32 %v980, %v981
        %vm983 = vcmp.lt.s32.totalorder %v964, 1
        %vm984 = vcmp.lt.s32.totalorder %v964, 2
        %vm985 = vcmp.lt.s32.totalorder %v964, 3
        %vm986 = vcmp.lt.s32.totalorder %v964, 4
        %v987 = vsel %vm983, %v967, %v970
        %v988 = vsel %vm986, %v976, 2102212464
        %v989 = vsel %vm985, %v973, %v988
        %v990 = vsel %vm984, %v987, %v989
        %v991 = vsel %vm983, %v970, %v973
        %v992 = vsel %vm986, %v979, 920167782
        %v993 = vsel %vm985, %v976, %v992
        %v994 = vsel %vm984, %v991, %v993
        %v995 = vsel %vm983, %v973, %v976
        %v996 = vsel %vm986, %v982, 1326507024
        %v997 = vsel %vm985, %v979, %v996
        %v998 = vsel %vm984, %v995, %v997
        %v999 = vshll.u32 %v959, 8
        %v1000 = vmul.u32.u64.compose %v999, %v998
        %v1001 = vextract.low.u32 %v1000
        %v1002 = vextract.high.u32 %v1000
        %v1003 = vmul.u32.u64.compose %v999, %v994
        %v1004 = vextract.low.u32 %v1003
        %v1005 = vextract.high.u32 %v1003
        %v1006 = vmul.u32 %v999, %v990
        %v1007 = vadd.s32 %v1002, %v1004
        %vm1008 = vc.u32 %v1002, %v1004
        %v1009 = vadd.s32 %v1005, 1
        %v1010 = vsel %vm1008, %v1009, %v1005
        %v1011 = vadd.s32 %v1006, %v1010
        %v1012 = vadd.s32 %v1011, 536870912
        %v1013 = vshrl.u32 %v1012, 30
        %v1014 = vshll.u32 %v1013, 30
        %v1015 = vsub.s32 %v1011, %v1014
        %vm1016 = vcmp.lt.s32.totalorder %v1015, 0
        %v1017 = vsub.s32 0, %v1015
        %v1018 = vsel %vm1016, %v1017, %v1015
        %v1019 = vclz %v1018
        %v1020 = vsub.s32 %v1019, 2
        %vm1021 = vcmp.gt.s32.totalorder 0, %v1020
        %v1022 = vsel %vm1021, 0, %v1020
        %v1023 = vsub.s32 32, %v1022
        %v1024 = vshll.u32 %v1015, %v1022
        %v1025 = vshrl.u32 %v1007, %v1023
        %v1026 = vor.u32 %v1024, %v1025
        %v1027 = vsub.s32 4294967266, %v1022
        %v1028 = vadd.s32 %v1027, 127
        %v1029 = vshll.u32 %v1028, 23
        %v1030 = vor.u32 4788187, %v1029
        %v1031 = vand.u32 2147483647, %v1030
        %v1033 = vcvt.s32.f32 %v1026
        %v1034 = vmul.f32 %v1033, %v1031
        %v1035 = vxor.u32 %v1034, 2147483648
        %v1036 = vsel %vm953, %v1035, %v1034
        %v1037 = vsub.s32 4, %v1013
        %v1038 = vsel %vm953, %v1037, %v1013
        %v1039 = vsel %vm952, %v307, %v1036
        %v1040 = vsel %vm952, 0, %v1038
        %v1041 = vcosq.f32.pop %v1039
        %v1042 = vsinq.f32.pop %v1039
        %vm1043 = vweird.f32 %v307
        %v1044 = vand.u32 %v1040, 3
        %vm1045 = vcmp.lt.s32.totalorder %v1044, 2
        %vm1046 = vcmp.eq.s32.totalorder %v1044, 0
        %v1047 = vxor.u32 %v1042, 2147483648
        %v1048 = vsel %vm1046, %v1041, %v1047
        %vm1049 = vcmp.eq.s32.totalorder %v1044, 2
        %v1050 = vxor.u32 %v1041, 2147483648
        %v1051 = vsel %vm1049, %v1050, %v1042
        %v1052 = vsel %vm1045, %v1048, %v1051
        %v1053 = vsel %vm1043, nan, %v1052
        %v1054 = vand.u32 2147483647, %v308
        %vm1055 = vcmp.le.f32.partialorder %v1054, 0.7853982
        %vm1056 = vcmp.lt.s32.totalorder %v308, 0
        %v1057 = vand.u32 %v308, 2139095040
        %v1058 = vshrl.u32 %v1057, 23
        %v1059 = vsub.s32 %v1058, 127
        %v1060 = vand.u32 2147483647, %v308
        %v1061 = vand.u32 %v1060, 8388607
        %v1062 = vor.u32 %v1061, 8388608
        %v1063 = vsub.s32 0, %v1062
        %v1064 = vadd.s32 %v1059, 1
        %vm1065 = vcmp.gt.s32.totalorder %v1064, 0
        %v1066 = vsel %vm1065, %v1064, 0
        %v1067 = vshrl.u32 %v1066, 5
        %v1068 = vand.u32 %v1066, 31
        %v1069 = vsub.s32 32, %v1068
        %v1070 = vshrl.u32 683565275, %v1069
        %v1071 = vshll.u32 683565275, %v1068
        %v1072 = vshrl.u32 2475754826, %v1069
        %v1073 = vor.u32 %v1071, %v1072
        %v1074 = vshll.u32 2475754826, %v1068
        %v1075 = vshrl.u32 2131351028, %v1069
        %v1076 = vor.u32 %v1074, %v1075
        %v1077 = vshll.u32 2131351028, %v1068
        %v1078 = vshrl.u32 2102212464, %v1069
        %v1079 = vor.u32 %v1077, %v1078
        %v1080 = vshll.u32 2102212464, %v1068
        %v1081 = vshrl.u32 920167782, %v1069
        %v1082 = vor.u32 %v1080, %v1081
        %v1083 = vshll.u32 920167782, %v1068
        %v1084 = vshrl.u32 1326507024, %v1069
        %v1085 = vor.u32 %v1083, %v1084
        %vm1086 = vcmp.lt.s32.totalorder %v1067, 1
        %vm1087 = vcmp.lt.s32.totalorder %v1067, 2
        %vm1088 = vcmp.lt.s32.totalorder %v1067, 3
        %vm1089 = vcmp.lt.s32.totalorder %v1067, 4
        %v1090 = vsel %vm1086, %v1070, %v1073
        %v1091 = vsel %vm1089, %v1079, 2102212464
        %v1092 = vsel %vm1088, %v1076, %v1091
        %v1093 = vsel %vm1087, %v1090, %v1092
        %v1094 = vsel %vm1086, %v1073, %v1076
        %v1095 = vsel %vm1089, %v1082, 920167782
        %v1096 = vsel %vm1088, %v1079, %v1095
        %v1097 = vsel %vm1087, %v1094, %v1096
        %v1098 = vsel %vm1086, %v1076, %v1079
        %v1099 = vsel %vm1089, %v1085, 1326507024
        %v1100 = vsel %vm1088, %v1082, %v1099
        %v1101 = vsel %vm1087, %v1098, %v1100
        %v1102 = vshll.u32 %v1062, 8
        %v1103 = vmul.u32.u64.compose %v1102, %v1101
        %v1104 = vextract.low.u32 %v1103
        %v1105 = vextract.high.u32 %v1103
        %v1106 = vmul.u32.u64.compose %v1102, %v1097
        %v1107 = vextract.low.u32 %v1106
        %v1108 = vextract.high.u32 %v1106
        %v1109 = vmul.u32 %v1102, %v1093
        %v1110 = vadd.s32 %v1105, %v1107
        %vm1111 = vc.u32 %v1105, %v1107
        %v1112 = vadd.s32 %v1108, 1
        %v1113 = vsel %vm1111, %v1112, %v1108
        %v1114 = vadd.s32 %v1109, %v1113
        %v1115 = vadd.s32 %v1114, 536870912
        %v1116 = vshrl.u32 %v1115, 30
        %v1117 = vshll.u32 %v1116, 30
        %v1118 = vsub.s32 %v1114, %v1117
        %vm1119 = vcmp.lt.s32.totalorder %v1118, 0
        %v1120 = vsub.s32 0, %v1118
        %v1121 = vsel %vm1119, %v1120, %v1118
        %v1122 = vclz %v1121
        %v1123 = vsub.s32 %v1122, 2
        %vm1124 = vcmp.gt.s32.totalorder 0, %v1123
        %v1125 = vsel %vm1124, 0, %v1123
        %v1126 = vsub.s32 32, %v1125
        %v1127 = vshll.u32 %v1118, %v1125
        %v1128 = vshrl.u32 %v1110, %v1126
        %v1129 = vor.u32 %v1127, %v1128
        %v1130 = vsub.s32 4294967266, %v1125
        %v1131 = vadd.s32 %v1130, 127
        %v1132 = vshll.u32 %v1131, 23
        %v1133 = vor.u32 4788187, %v1132
        %v1134 = vand.u32 2147483647, %v1133
        %v1136 = vcvt.s32.f32 %v1129
        %v1137 = vmul.f32 %v1136, %v1134
        %v1138 = vxor.u32 %v1137, 2147483648
        %v1139 = vsel %vm1056, %v1138, %v1137
        %v1140 = vsub.s32 4, %v1116
        %v1141 = vsel %vm1056, %v1140, %v1116
        %v1142 = vsel %vm1055, %v308, %v1139
        %v1143 = vsel %vm1055, 0, %v1141
        %v1144 = vcosq.f32.pop %v1142
        %v1145 = vsinq.f32.pop %v1142
        %vm1146 = vweird.f32 %v308
        %v1147 = vand.u32 %v1143, 3
        %vm1148 = vcmp.lt.s32.totalorder %v1147, 2
        %vm1149 = vcmp.eq.s32.totalorder %v1147, 0
        %v1150 = vxor.u32 %v1145, 2147483648
        %v1151 = vsel %vm1149, %v1144, %v1150
        %vm1152 = vcmp.eq.s32.totalorder %v1147, 2
        %v1153 = vxor.u32 %v1144, 2147483648
        %v1154 = vsel %vm1152, %v1153, %v1145
        %v1155 = vsel %vm1148, %v1151, %v1154
        %v1156 = vsel %vm1146, nan, %v1155
        %v1157 = vpack.c.bf16 %v950, %v847
        %v1158 = vpack.c.bf16 %v1156, %v1053
        %v1161 = vunpack.c.l.b16 %v1157
        %v1162 = vunpack.c.h.b16 %v1157
        %v1163 = vunpack.c.l.b16 %v1158
        %v1164 = vunpack.c.h.b16 %v1158
        %v1165 = vpack.c.b16 %v1161, %v1161
        %v1166 = vpack.c.b16 %v1162, %v1162
        %v1167 = vpack.c.b16 %v1163, %v1163
        %v1168 = vpack.c.b16 %v1164, %v1164
        %1173 = vst [vmem:[#allocation2 + $0x10] sm:$0xf] %v1165
        %1174 = vst [vmem:[#allocation2 + $0x14] sm:$0xf] %v1166
        %1175 = vst [vmem:[#allocation2 + $0x18] sm:$0xf] %v1167
        %1176 = vst [vmem:[#allocation2 + $0x1c] sm:$0xf] %v1168
        %v1177 = vld [vmem:[%s1] sm:$0xf]
        %v1178 = vld [vmem:[%s1 + $0x4] sm:$0xf]
        %v1179 = vld [vmem:[%s1 + $0x8] sm:$0xf]
        %v1180 = vld [vmem:[%s1 + $0xc] sm:$0xf]
        %v1181 = vld [vmem:[#allocation2] sm:$0xf]
        %v1182 = vld [vmem:[#allocation2 + $0x4] sm:$0xf]
        %v1183 = vld [vmem:[#allocation2 + $0x8] sm:$0xf]
        %v1184 = vld [vmem:[#allocation2 + $0xc] sm:$0xf]
        %v1185 = vld [vmem:[#allocation2 + $0x10] sm:$0xf]
        %v1186 = vld [vmem:[#allocation2 + $0x14] sm:$0xf]
        %v1187 = vld [vmem:[#allocation2 + $0x18] sm:$0xf]
        %v1188 = vld [vmem:[#allocation2 + $0x1c] sm:$0xf]
        %v1193 = vunpack.c.l.b16 %v1177
        %v1194 = vunpack.c.l.b16 %v1178
        %v1195 = vunpack.c.l.b16 %v1179
        %v1196 = vunpack.c.l.b16 %v1180
        %v1197 = vpack.c.b16 %v1194, %v1193
        %v1198 = vpack.c.b16 %v1196, %v1195
        %v1207 = vunpack.c.l.b16 %v1181
        %v1208 = vunpack.c.l.b16 %v1182
        %v1209 = vunpack.c.l.b16 %v1183
        %v1210 = vunpack.c.l.b16 %v1184
        %v1211 = vunpack.c.l.b16 %v1185
        %v1212 = vunpack.c.l.b16 %v1186
        %v1213 = vunpack.c.l.b16 %v1187
        %v1214 = vunpack.c.l.b16 %v1188
        %v1215 = vpack.c.b16 %v1208, %v1207
        %v1216 = vpack.c.b16 %v1210, %v1209
        %v1217 = vpack.c.b16 %v1212, %v1211
        %v1218 = vpack.c.b16 %v1214, %v1213
        %vm1223 = vcmask 523264
        %v1225 = vsel %vm1223, %v1197, 0
        %v1228 = vsel %vm1223, %v1198, 0
        %1230 = vmatprep.subr.bf16.mxu0 0
        %1231 = vmatpush1.bf16.msra.mxu0 0
        %1232 = vmatprep.subr.bf16.mxu0 0
        %1233 = vmatpush1.bf16.msra.mxu0 0
        %1234 = vmatprep.subr.bf16.mxu0 0
        %1235 = vmatpush1.bf16.msra.mxu0 0
        %1236 = vmatprep.subr.bf16.mxu0 0
        %1237 = vmatpush1.bf16.msra.mxu0 0
        %1238 = vmatprep.subr.bf16.mxu0 0
        %1239 = vmatpush1.bf16.msra.mxu0 %v1218
        %1240 = vmatprep.subr.bf16.mxu0 0
        %1241 = vmatpush1.bf16.msra.mxu0 %v1217
        %1242 = vmatprep.subr.bf16.mxu0 0
        %1243 = vmatpush1.bf16.msra.mxu0 %v1216
        %1244 = vmatprep.subr.bf16.mxu0 0
        %1245 = vmatpush1.bf16.msra.mxu0 %v1215
        %1246 = vmatprep.subr.bf16.mxu0 0
        %1247 = vmatpush2.bf16.msra.mxu0 0
        %1248 = vmatprep.subr.bf16.mxu0 0
        %1249 = vmatpush2.bf16.msra.mxu0 0
        %1250 = vmatprep.subr.bf16.mxu0 0
        %1251 = vmatpush2.bf16.msra.mxu0 0
        %1252 = vmatprep.subr.bf16.mxu0 0
        %1253 = vmatpush2.bf16.msra.mxu0 0
        %1254 = vmatprep.subr.bf16.mxu0 0
        %1255 = vmatpush2.bf16.msra.mxu0 0
        %1256 = vmatprep.subr.bf16.mxu0 0
        %1257 = vmatpush2.bf16.msra.mxu0 0
        %1258 = vmatprep.subr.bf16.mxu0 0
        %1259 = vmatpush2.bf16.msra.mxu0 0
        %1260 = vmatprep.subr.bf16.mxu0 0
        %1261 = vmatpush2.bf16.msra.mxu0 0
        %1262 = vmatprep.mubr.bf16.mxu0 0
        %1263 = vmatmul.mubr.bf16.gmra.mxu0 %v1225
        %v1264 = vpop.f32.mrf.mxu0
        %v1265 = vadd.f32 0.0, %v1264
        %v1266 = vpop.f32.mrf.mxu0
        %v1267 = vpop.f32.mrf.mxu0
        %v1268 = vadd.f32 0.0, %v1267
        %v1269 = vpop.f32.mrf.mxu0
        %1270 = vmatprep.mubr.bf16.mxu0 0
        %1271 = vmatmul.mubr.bf16.gmra.mxu0 %v1228
        %v1272 = vpop.f32.mrf.mxu0
        %v1273 = vadd.f32 0.0, %v1272
        %v1274 = vpop.f32.mrf.mxu0
        %v1275 = vpop.f32.mrf.mxu0
        %v1276 = vadd.f32 0.0, %v1275
        %v1277 = vpop.f32.mrf.mxu0
        %1278 = vdwg.mxu0
        %vm1279 = vcmp.ge.f32.partialorder %v1265, 0.0
        %vm1280 = vcmp.ge.f32.partialorder %v1268, 0.0
        %vm1281 = vcmp.ge.f32.partialorder %v1273, 0.0
        %vm1282 = vcmp.ge.f32.partialorder %v1276, 0.0
        %v1283 = vmul.f32 %v1265, 0.01
        %v1284 = vmul.f32 %v1268, 0.01
        %v1285 = vmul.f32 %v1273, 0.01
        %v1286 = vmul.f32 %v1276, 0.01
        %v1287 = vsel %vm1279, %v1265, %v1283
        %v1288 = vsel %vm1280, %v1268, %v1284
        %v1289 = vsel %vm1281, %v1273, %v1285
        %v1290 = vsel %vm1282, %v1276, %v1286
        %v1291 = vld [vmem:[%s3] sm:$0xf]
        %v1292 = vld [vmem:[%s3 + $0x4] sm:$0xf]
        %v1293 = vld [vmem:[%s3 + $0x8] sm:$0xf]
        %v1294 = vld [vmem:[%s3 + $0xc] sm:$0xf]
        %v1295 = vpack.c.bf16 %v1288, %v1287
        %v1296 = vpack.c.bf16 %v1290, %v1289
        %1297 = vset.pattern.permute.xlu0 0
        %1298 = vperm.xlu0 %1297, %v221
        %v1299 = vpop.permute.xlu0 %1298
        %1301 = vset.pattern.permute.xlu0 0
        %1302 = vperm.xlu0 %1301, %v222
        %v1303 = vpop.permute.xlu0 %1302
        %1305 = vset.pattern.permute.xlu0 0
        %1306 = vperm.xlu0 %1305, %v223
        %v1307 = vpop.permute.xlu0 %1306
        %1309 = vset.pattern.permute.xlu0 0
        %1310 = vperm.xlu0 %1309, %v224
        %v1311 = vpop.permute.xlu0 %1310
        %v1317 = vunpack.c.l.b16 %v1291
        %v1318 = vunpack.c.l.b16 %v1292
        %v1319 = vunpack.c.l.b16 %v1293
        %v1320 = vunpack.c.l.b16 %v1294
        %v1321 = vpack.c.b16 %v1318, %v1317
        %v1322 = vpack.c.b16 %v1320, %v1319
        %vm1323 = vcmask 261120
        %v1325 = vsel %vm1323, %v1321, 0
        %v1328 = vsel %vm1323, %v1322, 0
        %1330 = vmatprep.subr.bf16.mxu0 0
        %1331 = vmatpush1.bf16.msra.mxu0 0
        %1332 = vmatprep.subr.bf16.mxu0 0
        %1333 = vmatpush1.bf16.msra.mxu0 0
        %1334 = vmatprep.subr.bf16.mxu0 0
        %1335 = vmatpush1.bf16.msra.mxu0 0
        %1336 = vmatprep.subr.bf16.mxu0 0
        %1337 = vmatpush1.bf16.msra.mxu0 0
        %1338 = vmatprep.subr.bf16.mxu0 0
        %1339 = vmatpush1.bf16.msra.mxu0 0
        %1340 = vmatprep.subr.bf16.mxu0 0
        %1341 = vmatpush1.bf16.msra.mxu0 0
        %1342 = vmatprep.subr.bf16.mxu0 0
        %1343 = vmatpush1.bf16.msra.mxu0 %v1296
        %1344 = vmatprep.subr.bf16.mxu0 0
        %1345 = vmatpush1.bf16.msra.mxu0 %v1295
        %1346 = vmatprep.subr.bf16.mxu0 0
        %1347 = vmatpush2.bf16.msra.mxu0 0
        %1348 = vmatprep.subr.bf16.mxu0 0
        %1349 = vmatpush2.bf16.msra.mxu0 0
        %1350 = vmatprep.subr.bf16.mxu0 0
        %1351 = vmatpush2.bf16.msra.mxu0 0
        %1352 = vmatprep.subr.bf16.mxu0 0
        %1353 = vmatpush2.bf16.msra.mxu0 0
        %1354 = vmatprep.subr.bf16.mxu0 0
        %1355 = vmatpush2.bf16.msra.mxu0 0
        %1356 = vmatprep.subr.bf16.mxu0 0
        %1357 = vmatpush2.bf16.msra.mxu0 0
        %1358 = vmatprep.subr.bf16.mxu0 0
        %1359 = vmatpush2.bf16.msra.mxu0 0
        %1360 = vmatprep.subr.bf16.mxu0 0
        %1361 = vmatpush2.bf16.msra.mxu0 0
        %1362 = vmatprep.mubr.bf16.mxu0 0
        %1363 = vmatmul.mubr.bf16.gmra.mxu0 %v1325
        %v1364 = vpop.f32.mrf.mxu0
        %v1365 = vadd.f32 %v1299, %v1364
        %v1366 = vpop.f32.mrf.mxu0
        %v1367 = vpop.f32.mrf.mxu0
        %v1368 = vadd.f32 %v1303, %v1367
        %v1369 = vpop.f32.mrf.mxu0
        %1370 = vmatprep.mubr.bf16.mxu0 0
        %1371 = vmatmul.mubr.bf16.gmra.mxu0 %v1328
        %v1372 = vpop.f32.mrf.mxu0
        %v1373 = vadd.f32 %v1307, %v1372
        %v1374 = vpop.f32.mrf.mxu0
        %v1375 = vpop.f32.mrf.mxu0
        %v1376 = vadd.f32 %v1311, %v1375
        %v1377 = vpop.f32.mrf.mxu0
        %1378 = vdwg.mxu0
        %vm1379 = vcmp.ge.f32.partialorder %v1365, 0.0
        %vm1380 = vcmp.ge.f32.partialorder %v1368, 0.0
        %vm1381 = vcmp.ge.f32.partialorder %v1373, 0.0
        %vm1382 = vcmp.ge.f32.partialorder %v1376, 0.0
        %v1383 = vmul.f32 %v1365, 0.01
        %v1384 = vmul.f32 %v1368, 0.01
        %v1385 = vmul.f32 %v1373, 0.01
        %v1386 = vmul.f32 %v1376, 0.01
        %v1387 = vsel %vm1379, %v1365, %v1383
        %v1388 = vsel %vm1380, %v1368, %v1384
        %v1389 = vsel %vm1381, %v1373, %v1385
        %v1390 = vsel %vm1382, %v1376, %v1386
        %v1391 = vld [vmem:[%s3 + $0x10] sm:$0xf]
        %v1392 = vld [vmem:[%s3 + $0x14] sm:$0xf]
        %v1393 = vld [vmem:[%s3 + $0x18] sm:$0xf]
        %v1394 = vld [vmem:[%s3 + $0x1c] sm:$0xf]
        %v1395 = vpack.c.bf16 %v1388, %v1387
        %v1396 = vpack.c.bf16 %v1390, %v1389
        %1397 = vset.pattern.permute.xlu0 1
        %1398 = vperm.xlu0 %1397, %v221
        %v1399 = vpop.permute.xlu0 %1398
        %1401 = vset.pattern.permute.xlu0 1
        %1402 = vperm.xlu0 %1401, %v222
        %v1403 = vpop.permute.xlu0 %1402
        %1405 = vset.pattern.permute.xlu0 1
        %1406 = vperm.xlu0 %1405, %v223
        %v1407 = vpop.permute.xlu0 %1406
        %1409 = vset.pattern.permute.xlu0 1
        %1410 = vperm.xlu0 %1409, %v224
        %v1411 = vpop.permute.xlu0 %1410
        %v1417 = vunpack.c.l.b16 %v1391
        %v1418 = vunpack.c.l.b16 %v1392
        %v1419 = vunpack.c.l.b16 %v1393
        %v1420 = vunpack.c.l.b16 %v1394
        %v1421 = vpack.c.b16 %v1418, %v1417
        %v1422 = vpack.c.b16 %v1420, %v1419
        %v1424 = vsel %vm1323, %v1421, 0
        %v1427 = vsel %vm1323, %v1422, 0
        %1429 = vmatprep.subr.bf16.mxu0 0
        %1430 = vmatpush1.bf16.msra.mxu0 0
        %1431 = vmatprep.subr.bf16.mxu0 0
        %1432 = vmatpush1.bf16.msra.mxu0 0
        %1433 = vmatprep.subr.bf16.mxu0 0
        %1434 = vmatpush1.bf16.msra.mxu0 0
        %1435 = vmatprep.subr.bf16.mxu0 0
        %1436 = vmatpush1.bf16.msra.mxu0 0
        %1437 = vmatprep.subr.bf16.mxu0 0
        %1438 = vmatpush1.bf16.msra.mxu0 0
        %1439 = vmatprep.subr.bf16.mxu0 0
        %1440 = vmatpush1.bf16.msra.mxu0 0
        %1441 = vmatprep.subr.bf16.mxu0 0
        %1442 = vmatpush1.bf16.msra.mxu0 %v1396
        %1443 = vmatprep.subr.bf16.mxu0 0
        %1444 = vmatpush1.bf16.msra.mxu0 %v1395
        %1445 = vmatprep.subr.bf16.mxu0 0
        %1446 = vmatpush2.bf16.msra.mxu0 0
        %1447 = vmatprep.subr.bf16.mxu0 0
        %1448 = vmatpush2.bf16.msra.mxu0 0
        %1449 = vmatprep.subr.bf16.mxu0 0
        %1450 = vmatpush2.bf16.msra.mxu0 0
        %1451 = vmatprep.subr.bf16.mxu0 0
        %1452 = vmatpush2.bf16.msra.mxu0 0
        %1453 = vmatprep.subr.bf16.mxu0 0
        %1454 = vmatpush2.bf16.msra.mxu0 0
        %1455 = vmatprep.subr.bf16.mxu0 0
        %1456 = vmatpush2.bf16.msra.mxu0 0
        %1457 = vmatprep.subr.bf16.mxu0 0
        %1458 = vmatpush2.bf16.msra.mxu0 0
        %1459 = vmatprep.subr.bf16.mxu0 0
        %1460 = vmatpush2.bf16.msra.mxu0 0
        %1461 = vmatprep.mubr.bf16.mxu0 0
        %1462 = vmatmul.mubr.bf16.gmra.mxu0 %v1424
        %v1463 = vpop.f32.mrf.mxu0
        %v1464 = vadd.f32 %v1399, %v1463
        %v1465 = vpop.f32.mrf.mxu0
        %v1466 = vpop.f32.mrf.mxu0
        %v1467 = vadd.f32 %v1403, %v1466
        %v1468 = vpop.f32.mrf.mxu0
        %1469 = vmatprep.mubr.bf16.mxu0 0
        %1470 = vmatmul.mubr.bf16.gmra.mxu0 %v1427
        %v1471 = vpop.f32.mrf.mxu0
        %v1472 = vadd.f32 %v1407, %v1471
        %v1473 = vpop.f32.mrf.mxu0
        %v1474 = vpop.f32.mrf.mxu0
        %v1475 = vadd.f32 %v1411, %v1474
        %v1476 = vpop.f32.mrf.mxu0
        %1477 = vdwg.mxu0
        %vm1478 = vcmp.ge.f32.partialorder %v1464, 0.0
        %vm1479 = vcmp.ge.f32.partialorder %v1467, 0.0
        %vm1480 = vcmp.ge.f32.partialorder %v1472, 0.0
        %vm1481 = vcmp.ge.f32.partialorder %v1475, 0.0
        %v1482 = vmul.f32 %v1464, 0.01
        %v1483 = vmul.f32 %v1467, 0.01
        %v1484 = vmul.f32 %v1472, 0.01
        %v1485 = vmul.f32 %v1475, 0.01
        %v1486 = vsel %vm1478, %v1464, %v1482
        %v1487 = vsel %vm1479, %v1467, %v1483
        %v1488 = vsel %vm1480, %v1472, %v1484
        %v1489 = vsel %vm1481, %v1475, %v1485
        %v1490 = vld [vmem:[%s3 + $0x20] sm:$0xf]
        %v1491 = vld [vmem:[%s3 + $0x24] sm:$0xf]
        %v1492 = vld [vmem:[%s3 + $0x28] sm:$0xf]
        %v1493 = vld [vmem:[%s3 + $0x2c] sm:$0xf]
        %v1494 = vpack.c.bf16 %v1487, %v1486
        %v1495 = vpack.c.bf16 %v1489, %v1488
        %1496 = vset.pattern.permute.xlu0 2
        %1497 = vperm.xlu0 %1496, %v221
        %v1498 = vpop.permute.xlu0 %1497
        %1500 = vset.pattern.permute.xlu0 2
        %1501 = vperm.xlu0 %1500, %v222
        %v1502 = vpop.permute.xlu0 %1501
        %1504 = vset.pattern.permute.xlu0 2
        %1505 = vperm.xlu0 %1504, %v223
        %v1506 = vpop.permute.xlu0 %1505
        %1508 = vset.pattern.permute.xlu0 2
        %1509 = vperm.xlu0 %1508, %v224
        %v1510 = vpop.permute.xlu0 %1509
        %v1516 = vunpack.c.l.b16 %v1490
        %v1517 = vunpack.c.l.b16 %v1491
        %v1518 = vunpack.c.l.b16 %v1492
        %v1519 = vunpack.c.l.b16 %v1493
        %v1520 = vpack.c.b16 %v1517, %v1516
        %v1521 = vpack.c.b16 %v1519, %v1518
        %v1523 = vsel %vm1323, %v1520, 0
        %v1526 = vsel %vm1323, %v1521, 0
        %1528 = vmatprep.subr.bf16.mxu0 0
        %1529 = vmatpush1.bf16.msra.mxu0 0
        %1530 = vmatprep.subr.bf16.mxu0 0
        %1531 = vmatpush1.bf16.msra.mxu0 0
        %1532 = vmatprep.subr.bf16.mxu0 0
        %1533 = vmatpush1.bf16.msra.mxu0 0
        %1534 = vmatprep.subr.bf16.mxu0 0
        %1535 = vmatpush1.bf16.msra.mxu0 0
        %1536 = vmatprep.subr.bf16.mxu0 0
        %1537 = vmatpush1.bf16.msra.mxu0 0
        %1538 = vmatprep.subr.bf16.mxu0 0
        %1539 = vmatpush1.bf16.msra.mxu0 0
        %1540 = vmatprep.subr.bf16.mxu0 0
        %1541 = vmatpush1.bf16.msra.mxu0 %v1495
        %1542 = vmatprep.subr.bf16.mxu0 0
        %1543 = vmatpush1.bf16.msra.mxu0 %v1494
        %1544 = vmatprep.subr.bf16.mxu0 0
        %1545 = vmatpush2.bf16.msra.mxu0 0
        %1546 = vmatprep.subr.bf16.mxu0 0
        %1547 = vmatpush2.bf16.msra.mxu0 0
        %1548 = vmatprep.subr.bf16.mxu0 0
        %1549 = vmatpush2.bf16.msra.mxu0 0
        %1550 = vmatprep.subr.bf16.mxu0 0
        %1551 = vmatpush2.bf16.msra.mxu0 0
        %1552 = vmatprep.subr.bf16.mxu0 0
        %1553 = vmatpush2.bf16.msra.mxu0 0
        %1554 = vmatprep.subr.bf16.mxu0 0
        %1555 = vmatpush2.bf16.msra.mxu0 0
        %1556 = vmatprep.subr.bf16.mxu0 0
        %1557 = vmatpush2.bf16.msra.mxu0 0
        %1558 = vmatprep.subr.bf16.mxu0 0
        %1559 = vmatpush2.bf16.msra.mxu0 0
        %1560 = vmatprep.mubr.bf16.mxu0 0
        %1561 = vmatmul.mubr.bf16.gmra.mxu0 %v1523
        %v1562 = vpop.f32.mrf.mxu0
        %v1563 = vadd.f32 %v1498, %v1562
        %v1564 = vpop.f32.mrf.mxu0
        %v1565 = vpop.f32.mrf.mxu0
        %v1566 = vadd.f32 %v1502, %v1565
        %v1567 = vpop.f32.mrf.mxu0
        %1568 = vmatprep.mubr.bf16.mxu0 0
        %1569 = vmatmul.mubr.bf16.gmra.mxu0 %v1526
        %v1570 = vpop.f32.mrf.mxu0
        %v1571 = vadd.f32 %v1506, %v1570
        %v1572 = vpop.f32.mrf.mxu0
        %v1573 = vpop.f32.mrf.mxu0
        %v1574 = vadd.f32 %v1510, %v1573
        %v1575 = vpop.f32.mrf.mxu0
        %1576 = vdwg.mxu0
        %vm1577 = vcmp.ge.f32.partialorder %v1563, 0.0
        %vm1578 = vcmp.ge.f32.partialorder %v1566, 0.0
        %vm1579 = vcmp.ge.f32.partialorder %v1571, 0.0
        %vm1580 = vcmp.ge.f32.partialorder %v1574, 0.0
        %v1581 = vmul.f32 %v1563, 0.01
        %v1582 = vmul.f32 %v1566, 0.01
        %v1583 = vmul.f32 %v1571, 0.01
        %v1584 = vmul.f32 %v1574, 0.01
        %v1585 = vsel %vm1577, %v1563, %v1581
        %v1586 = vsel %vm1578, %v1566, %v1582
        %v1587 = vsel %vm1579, %v1571, %v1583
        %v1588 = vsel %vm1580, %v1574, %v1584
        %v1589 = vpack.c.bf16 %v1586, %v1585
        %v1590 = vpack.c.bf16 %v1588, %v1587
        %v1593 = vunpack.c.l.b16 %v1589
        %v1594 = vunpack.c.h.b16 %v1589
        %v1595 = vunpack.c.l.b16 %v1590
        %v1596 = vunpack.c.h.b16 %v1590
        %v1597 = vpack.c.b16 %v1593, %v1593
        %v1598 = vpack.c.b16 %v1594, %v1594
        %v1599 = vpack.c.b16 %v1595, %v1595
        %v1600 = vpack.c.b16 %v1596, %v1596
        %1605 = vst [vmem:[#allocation2 + $0x20] sm:$0xf] %v1597
        %1606 = vst [vmem:[#allocation2 + $0x24] sm:$0xf] %v1598
        %1607 = vst [vmem:[#allocation2 + $0x28] sm:$0xf] %v1599
        %1608 = vst [vmem:[#allocation2 + $0x2c] sm:$0xf] %v1600
        %v1609 = vld [vmem:[%s2] sm:$0xf]
        %v1610 = vld [vmem:[%s2 + $0x4] sm:$0xf]
        %v1611 = vld [vmem:[%s2 + $0x8] sm:$0xf]
        %v1612 = vld [vmem:[%s2 + $0xc] sm:$0xf]
        %v1613 = vld [vmem:[#allocation2] sm:$0xf]
        %v1614 = vld [vmem:[#allocation2 + $0x4] sm:$0xf]
        %v1615 = vld [vmem:[#allocation2 + $0x8] sm:$0xf]
        %v1616 = vld [vmem:[#allocation2 + $0xc] sm:$0xf]
        %v1617 = vld [vmem:[#allocation2 + $0x10] sm:$0xf]
        %v1618 = vld [vmem:[#allocation2 + $0x14] sm:$0xf]
        %v1619 = vld [vmem:[#allocation2 + $0x18] sm:$0xf]
        %v1620 = vld [vmem:[#allocation2 + $0x1c] sm:$0xf]
        %v1621 = vld [vmem:[#allocation2 + $0x20] sm:$0xf]
        %v1622 = vld [vmem:[#allocation2 + $0x24] sm:$0xf]
        %v1623 = vld [vmem:[#allocation2 + $0x28] sm:$0xf]
        %v1624 = vld [vmem:[#allocation2 + $0x2c] sm:$0xf]
        %v1629 = vunpack.c.l.b16 %v1609
        %v1630 = vunpack.c.l.b16 %v1610
        %v1631 = vunpack.c.l.b16 %v1611
        %v1632 = vunpack.c.l.b16 %v1612
        %v1633 = vpack.c.b16 %v1630, %v1629
        %v1634 = vpack.c.b16 %v1632, %v1631
        %v1647 = vunpack.c.l.b16 %v1613
        %v1648 = vunpack.c.l.b16 %v1614
        %v1649 = vunpack.c.l.b16 %v1615
        %v1650 = vunpack.c.l.b16 %v1616
        %v1651 = vunpack.c.l.b16 %v1617
        %v1652 = vunpack.c.l.b16 %v1618
        %v1653 = vunpack.c.l.b16 %v1619
        %v1654 = vunpack.c.l.b16 %v1620
        %v1655 = vunpack.c.l.b16 %v1621
        %v1656 = vunpack.c.l.b16 %v1622
        %v1657 = vunpack.c.l.b16 %v1623
        %v1658 = vunpack.c.l.b16 %v1624
        %v1659 = vpack.c.b16 %v1648, %v1647
        %v1660 = vpack.c.b16 %v1650, %v1649
        %v1661 = vpack.c.b16 %v1652, %v1651
        %v1662 = vpack.c.b16 %v1654, %v1653
        %v1663 = vpack.c.b16 %v1656, %v1655
        %v1664 = vpack.c.b16 %v1658, %v1657
        %vm1671 = vcmask 785408
        %v1673 = vsel %vm1671, %v1633, 0
        %v1676 = vsel %vm1671, %v1634, 0
        %1678 = vmatprep.subr.bf16.mxu0 0
        %1679 = vmatpush1.bf16.msra.mxu0 0
        %1680 = vmatprep.subr.bf16.mxu0 0
        %1681 = vmatpush1.bf16.msra.mxu0 0
        %1682 = vmatprep.subr.bf16.mxu0 0
        %1683 = vmatpush1.bf16.msra.mxu0 %v1664
        %1684 = vmatprep.subr.bf16.mxu0 0
        %1685 = vmatpush1.bf16.msra.mxu0 %v1663
        %1686 = vmatprep.subr.bf16.mxu0 0
        %1687 = vmatpush1.bf16.msra.mxu0 %v1662
        %1688 = vmatprep.subr.bf16.mxu0 0
        %1689 = vmatpush1.bf16.msra.mxu0 %v1661
        %1690 = vmatprep.subr.bf16.mxu0 0
        %1691 = vmatpush1.bf16.msra.mxu0 %v1660
        %1692 = vmatprep.subr.bf16.mxu0 0
        %1693 = vmatpush1.bf16.msra.mxu0 %v1659
        %1694 = vmatprep.subr.bf16.mxu0 0
        %1695 = vmatpush2.bf16.msra.mxu0 0
        %1696 = vmatprep.subr.bf16.mxu0 0
        %1697 = vmatpush2.bf16.msra.mxu0 0
        %1698 = vmatprep.subr.bf16.mxu0 0
        %1699 = vmatpush2.bf16.msra.mxu0 0
        %1700 = vmatprep.subr.bf16.mxu0 0
        %1701 = vmatpush2.bf16.msra.mxu0 0
        %1702 = vmatprep.subr.bf16.mxu0 0
        %1703 = vmatpush2.bf16.msra.mxu0 0
        %1704 = vmatprep.subr.bf16.mxu0 0
        %1705 = vmatpush2.bf16.msra.mxu0 0
        %1706 = vmatprep.subr.bf16.mxu0 0
        %1707 = vmatpush2.bf16.msra.mxu0 0
        %1708 = vmatprep.subr.bf16.mxu0 0
        %1709 = vmatpush2.bf16.msra.mxu0 0
        %1710 = vmatprep.mubr.bf16.mxu0 0
        %1711 = vmatmul.mubr.bf16.gmra.mxu0 %v1673
        %v1712 = vpop.f32.mrf.mxu0
        %v1713 = vadd.f32 0.0, %v1712
        %v1714 = vpop.f32.mrf.mxu0
        %v1715 = vpop.f32.mrf.mxu0
        %v1716 = vadd.f32 0.0, %v1715
        %v1717 = vpop.f32.mrf.mxu0
        %1718 = vmatprep.mubr.bf16.mxu0 0
        %1719 = vmatmul.mubr.bf16.gmra.mxu0 %v1676
        %v1720 = vpop.f32.mrf.mxu0
        %v1721 = vadd.f32 0.0, %v1720
        %v1722 = vpop.f32.mrf.mxu0
        %v1723 = vpop.f32.mrf.mxu0
        %v1724 = vadd.f32 0.0, %v1723
        %v1725 = vpop.f32.mrf.mxu0
        %1726 = vdwg.mxu0
        %vm1727 = vcmp.ge.f32.partialorder %v1713, 0.0
        %vm1728 = vcmp.ge.f32.partialorder %v1716, 0.0
        %vm1729 = vcmp.ge.f32.partialorder %v1721, 0.0
        %vm1730 = vcmp.ge.f32.partialorder %v1724, 0.0
        %v1731 = vmul.f32 %v1713, 0.01
        %v1732 = vmul.f32 %v1716, 0.01
        %v1733 = vmul.f32 %v1721, 0.01
        %v1734 = vmul.f32 %v1724, 0.01
        %v1735 = vsel %vm1727, %v1713, %v1731
        %v1736 = vsel %vm1728, %v1716, %v1732
        %v1737 = vsel %vm1729, %v1721, %v1733
        %v1738 = vsel %vm1730, %v1724, %v1734
        %v1739 = vld [vmem:[%s3 + $0x30] sm:$0xf]
        %v1740 = vld [vmem:[%s3 + $0x34] sm:$0xf]
        %v1741 = vld [vmem:[%s3 + $0x38] sm:$0xf]
        %v1742 = vld [vmem:[%s3 + $0x3c] sm:$0xf]
        %v1743 = vpack.c.bf16 %v1736, %v1735
        %v1744 = vpack.c.bf16 %v1738, %v1737
        %1745 = vset.pattern.permute.xlu0 3
        %1746 = vperm.xlu0 %1745, %v221
        %v1747 = vpop.permute.xlu0 %1746
        %1749 = vset.pattern.permute.xlu0 3
        %1750 = vperm.xlu0 %1749, %v222
        %v1751 = vpop.permute.xlu0 %1750
        %1753 = vset.pattern.permute.xlu0 3
        %1754 = vperm.xlu0 %1753, %v223
        %v1755 = vpop.permute.xlu0 %1754
        %1757 = vset.pattern.permute.xlu0 3
        %1758 = vperm.xlu0 %1757, %v224
        %v1759 = vpop.permute.xlu0 %1758
        %v1765 = vunpack.c.l.b16 %v1739
        %v1766 = vunpack.c.l.b16 %v1740
        %v1767 = vunpack.c.l.b16 %v1741
        %v1768 = vunpack.c.l.b16 %v1742
        %v1769 = vpack.c.b16 %v1766, %v1765
        %v1770 = vpack.c.b16 %v1768, %v1767
        %v1772 = vsel %vm1323, %v1769, 0
        %v1775 = vsel %vm1323, %v1770, 0
        %1777 = vmatprep.subr.bf16.mxu0 0
        %1778 = vmatpush1.bf16.msra.mxu0 0
        %1779 = vmatprep.subr.bf16.mxu0 0
        %1780 = vmatpush1.bf16.msra.mxu0 0
        %1781 = vmatprep.subr.bf16.mxu0 0
        %1782 = vmatpush1.bf16.msra.mxu0 0
        %1783 = vmatprep.subr.bf16.mxu0 0
        %1784 = vmatpush1.bf16.msra.mxu0 0
        %1785 = vmatprep.subr.bf16.mxu0 0
        %1786 = vmatpush1.bf16.msra.mxu0 0
        %1787 = vmatprep.subr.bf16.mxu0 0
        %1788 = vmatpush1.bf16.msra.mxu0 0
        %1789 = vmatprep.subr.bf16.mxu0 0
        %1790 = vmatpush1.bf16.msra.mxu0 %v1744
        %1791 = vmatprep.subr.bf16.mxu0 0
        %1792 = vmatpush1.bf16.msra.mxu0 %v1743
        %1793 = vmatprep.subr.bf16.mxu0 0
        %1794 = vmatpush2.bf16.msra.mxu0 0
        %1795 = vmatprep.subr.bf16.mxu0 0
        %1796 = vmatpush2.bf16.msra.mxu0 0
        %1797 = vmatprep.subr.bf16.mxu0 0
        %1798 = vmatpush2.bf16.msra.mxu0 0
        %1799 = vmatprep.subr.bf16.mxu0 0
        %1800 = vmatpush2.bf16.msra.mxu0 0
        %1801 = vmatprep.subr.bf16.mxu0 0
        %1802 = vmatpush2.bf16.msra.mxu0 0
        %1803 = vmatprep.subr.bf16.mxu0 0
        %1804 = vmatpush2.bf16.msra.mxu0 0
        %1805 = vmatprep.subr.bf16.mxu0 0
        %1806 = vmatpush2.bf16.msra.mxu0 0
        %1807 = vmatprep.subr.bf16.mxu0 0
        %1808 = vmatpush2.bf16.msra.mxu0 0
        %1809 = vmatprep.mubr.bf16.mxu0 0
        %1810 = vmatmul.mubr.bf16.gmra.mxu0 %v1772
        %v1811 = vpop.f32.mrf.mxu0
        %v1812 = vadd.f32 %v1747, %v1811
        %v1813 = vpop.f32.mrf.mxu0
        %v1814 = vpop.f32.mrf.mxu0
        %v1815 = vadd.f32 %v1751, %v1814
        %v1816 = vpop.f32.mrf.mxu0
        %1817 = vmatprep.mubr.bf16.mxu0 0
        %1818 = vmatmul.mubr.bf16.gmra.mxu0 %v1775
        %v1819 = vpop.f32.mrf.mxu0
        %v1820 = vadd.f32 %v1755, %v1819
        %v1821 = vpop.f32.mrf.mxu0
        %v1822 = vpop.f32.mrf.mxu0
        %v1823 = vadd.f32 %v1759, %v1822
        %v1824 = vpop.f32.mrf.mxu0
        %1825 = vdwg.mxu0
        %vm1826 = vcmp.ge.f32.partialorder %v1812, 0.0
        %vm1827 = vcmp.ge.f32.partialorder %v1815, 0.0
        %vm1828 = vcmp.ge.f32.partialorder %v1820, 0.0
        %vm1829 = vcmp.ge.f32.partialorder %v1823, 0.0
        %v1830 = vmul.f32 %v1812, 0.01
        %v1831 = vmul.f32 %v1815, 0.01
        %v1832 = vmul.f32 %v1820, 0.01
        %v1833 = vmul.f32 %v1823, 0.01
        %v1834 = vsel %vm1826, %v1812, %v1830
        %v1835 = vsel %vm1827, %v1815, %v1831
        %v1836 = vsel %vm1828, %v1820, %v1832
        %v1837 = vsel %vm1829, %v1823, %v1833
        %v1838 = vld [vmem:[%s3 + $0x40] sm:$0xf]
        %v1839 = vld [vmem:[%s3 + $0x44] sm:$0xf]
        %v1840 = vld [vmem:[%s3 + $0x48] sm:$0xf]
        %v1841 = vld [vmem:[%s3 + $0x4c] sm:$0xf]
        %v1842 = vpack.c.bf16 %v1835, %v1834
        %v1843 = vpack.c.bf16 %v1837, %v1836
        %1844 = vset.pattern.permute.xlu0 4
        %1845 = vperm.xlu0 %1844, %v221
        %v1846 = vpop.permute.xlu0 %1845
        %1848 = vset.pattern.permute.xlu0 4
        %1849 = vperm.xlu0 %1848, %v222
        %v1850 = vpop.permute.xlu0 %1849
        %1852 = vset.pattern.permute.xlu0 4
        %1853 = vperm.xlu0 %1852, %v223
        %v1854 = vpop.permute.xlu0 %1853
        %1856 = vset.pattern.permute.xlu0 4
        %1857 = vperm.xlu0 %1856, %v224
        %v1858 = vpop.permute.xlu0 %1857
        %v1864 = vunpack.c.l.b16 %v1838
        %v1865 = vunpack.c.l.b16 %v1839
        %v1866 = vunpack.c.l.b16 %v1840
        %v1867 = vunpack.c.l.b16 %v1841
        %v1868 = vpack.c.b16 %v1865, %v1864
        %v1869 = vpack.c.b16 %v1867, %v1866
        %v1871 = vsel %vm1323, %v1868, 0
        %v1874 = vsel %vm1323, %v1869, 0
        %1876 = vmatprep.subr.bf16.mxu0 0
        %1877 = vmatpush1.bf16.msra.mxu0 0
        %1878 = vmatprep.subr.bf16.mxu0 0
        %1879 = vmatpush1.bf16.msra.mxu0 0
        %1880 = vmatprep.subr.bf16.mxu0 0
        %1881 = vmatpush1.bf16.msra.mxu0 0
        %1882 = vmatprep.subr.bf16.mxu0 0
        %1883 = vmatpush1.bf16.msra.mxu0 0
        %1884 = vmatprep.subr.bf16.mxu0 0
        %1885 = vmatpush1.bf16.msra.mxu0 0
        %1886 = vmatprep.subr.bf16.mxu0 0
        %1887 = vmatpush1.bf16.msra.mxu0 0
        %1888 = vmatprep.subr.bf16.mxu0 0
        %1889 = vmatpush1.bf16.msra.mxu0 %v1843
        %1890 = vmatprep.subr.bf16.mxu0 0
        %1891 = vmatpush1.bf16.msra.mxu0 %v1842
        %1892 = vmatprep.subr.bf16.mxu0 0
        %1893 = vmatpush2.bf16.msra.mxu0 0
        %1894 = vmatprep.subr.bf16.mxu0 0
        %1895 = vmatpush2.bf16.msra.mxu0 0
        %1896 = vmatprep.subr.bf16.mxu0 0
        %1897 = vmatpush2.bf16.msra.mxu0 0
        %1898 = vmatprep.subr.bf16.mxu0 0
        %1899 = vmatpush2.bf16.msra.mxu0 0
        %1900 = vmatprep.subr.bf16.mxu0 0
        %1901 = vmatpush2.bf16.msra.mxu0 0
        %1902 = vmatprep.subr.bf16.mxu0 0
        %1903 = vmatpush2.bf16.msra.mxu0 0
        %1904 = vmatprep.subr.bf16.mxu0 0
        %1905 = vmatpush2.bf16.msra.mxu0 0
        %1906 = vmatprep.subr.bf16.mxu0 0
        %1907 = vmatpush2.bf16.msra.mxu0 0
        %1908 = vmatprep.mubr.bf16.mxu0 0
        %1909 = vmatmul.mubr.bf16.gmra.mxu0 %v1871
        %v1910 = vpop.f32.mrf.mxu0
        %v1911 = vadd.f32 %v1846, %v1910
        %v1912 = vpop.f32.mrf.mxu0
        %v1913 = vpop.f32.mrf.mxu0
        %v1914 = vadd.f32 %v1850, %v1913
        %v1915 = vpop.f32.mrf.mxu0
        %1916 = vmatprep.mubr.bf16.mxu0 0
        %1917 = vmatmul.mubr.bf16.gmra.mxu0 %v1874
        %v1918 = vpop.f32.mrf.mxu0
        %v1919 = vadd.f32 %v1854, %v1918
        %v1920 = vpop.f32.mrf.mxu0
        %v1921 = vpop.f32.mrf.mxu0
        %v1922 = vadd.f32 %v1858, %v1921
        %v1923 = vpop.f32.mrf.mxu0
        %1924 = vdwg.mxu0
        %vm1925 = vcmp.ge.f32.partialorder %v1911, 0.0
        %vm1926 = vcmp.ge.f32.partialorder %v1914, 0.0
        %vm1927 = vcmp.ge.f32.partialorder %v1919, 0.0
        %vm1928 = vcmp.ge.f32.partialorder %v1922, 0.0
        %v1929 = vmul.f32 %v1911, 0.01
        %v1930 = vmul.f32 %v1914, 0.01
        %v1931 = vmul.f32 %v1919, 0.01
        %v1932 = vmul.f32 %v1922, 0.01
        %v1933 = vsel %vm1925, %v1911, %v1929
        %v1934 = vsel %vm1926, %v1914, %v1930
        %v1935 = vsel %vm1927, %v1919, %v1931
        %v1936 = vsel %vm1928, %v1922, %v1932
        %v1937 = vld [vmem:[%s3 + $0x50] sm:$0xf]
        %v1938 = vpack.c.bf16 %v1934, %v1933
        %v1939 = vpack.c.bf16 %v1936, %v1935
        %v1941 = vsel %vm1323, %v1937, 0
        %1943 = vmatprep.subr.bf16.mxu0 0
        %1944 = vmatpush1.bf16.msra.mxu0 0
        %1945 = vmatprep.subr.bf16.mxu0 0
        %1946 = vmatpush1.bf16.msra.mxu0 0
        %1947 = vmatprep.subr.bf16.mxu0 0
        %1948 = vmatpush1.bf16.msra.mxu0 0
        %1949 = vmatprep.subr.bf16.mxu0 0
        %1950 = vmatpush1.bf16.msra.mxu0 0
        %1951 = vmatprep.subr.bf16.mxu0 0
        %1952 = vmatpush1.bf16.msra.mxu0 0
        %1953 = vmatprep.subr.bf16.mxu0 0
        %1954 = vmatpush1.bf16.msra.mxu0 0
        %1955 = vmatprep.subr.bf16.mxu0 0
        %1956 = vmatpush1.bf16.msra.mxu0 %v1939
        %1957 = vmatprep.subr.bf16.mxu0 0
        %1958 = vmatpush1.bf16.msra.mxu0 %v1938
        %1959 = vmatprep.subr.bf16.mxu0 0
        %1960 = vmatpush2.bf16.msra.mxu0 0
        %1961 = vmatprep.subr.bf16.mxu0 0
        %1962 = vmatpush2.bf16.msra.mxu0 0
        %1963 = vmatprep.subr.bf16.mxu0 0
        %1964 = vmatpush2.bf16.msra.mxu0 0
        %1965 = vmatprep.subr.bf16.mxu0 0
        %1966 = vmatpush2.bf16.msra.mxu0 0
        %1967 = vmatprep.subr.bf16.mxu0 0
        %1968 = vmatpush2.bf16.msra.mxu0 0
        %1969 = vmatprep.subr.bf16.mxu0 0
        %1970 = vmatpush2.bf16.msra.mxu0 0
        %1971 = vmatprep.subr.bf16.mxu0 0
        %1972 = vmatpush2.bf16.msra.mxu0 0
        %1973 = vmatprep.subr.bf16.mxu0 0
        %1974 = vmatpush2.bf16.msra.mxu0 0
        %1975 = vmatprep.mubr.bf16.mxu0 0
        %1976 = vmatmul.mubr.bf16.gmra.mxu0 %v1941
        %v1977 = vpop.f32.mrf.mxu0
        %v1978 = vadd.f32 0.0, %v1977
        %v1979 = vpop.f32.mrf.mxu0
        %v1980 = vpop.f32.mrf.mxu0
        %v1981 = vpop.f32.mrf.mxu0
        %1982 = vdwg.mxu0
        %1983 = vset.pattern.permute.xlu0 5
        %1984 = vperm.xlu0 %1983, %v221
        %v1985 = vpop.permute.xlu0 %1984
        %v1987 = vadd.f32 %v1978, %v1985
        %1988 = vst [vmem:[%s214] sm:$0x1] %v1987
        %s1989 = sand.u32 %s137, 1
        %s1990 = scalar_lea.sflag [#allocation4], %s1989
        %s1991 = sand.u32 %s137, 1
        %s1992 = scalar_lea.vmem [#allocation3], %s1991
        // Predicated region
        $region41: #{_forward_impl.1} parent=39 // pred_check
          %p1993 = pneg %p147
        $region42: #{_forward_impl.1} parent=39 // pred_check_branch
          %1995 = sbr.rel (%p1993) target = $region44
        $region43: #{_forward_impl.1} parent=39 // pred_region
          %s1997 = ssub.s32 16, 16
          %1998 = vsyncadd %s1990, %s1997
          %s1999 = smul.addr %s19, 16
          %s2000 = scalar_lea.hbm %s5, %s1999
          %s2002 = sshll.u32 %s1992, 4
          %s2003 = int_to_ptr.vmem [resolvable:$true] %s2002
          %2005 = dma.vmem_to_hbm [thread:$0]  %s2003, 16, %s2000, %s1990
        $region44: #{_forward_impl.1} parent=39 // pred_fallthru
          _
      $region40: #{_forward_impl.1} parent=5 // pred_fallthru
        _
      %p2006 = scmp.le.s32.totalorder 2, %s14
      // Predicated region
      $region45: #{_forward_impl.1} parent=5 // pred_check
        %p2007 = pneg %p2006
      $region46: #{_forward_impl.1} parent=5 // pred_check_branch
        %2009 = sbr.rel (%p2007) target = $region48
      $region47: #{_forward_impl.1} parent=5 // pred_region
        %s2010 = ssub.s32 %s14, 2
        // Predicated region
        $region49: #{_forward_impl.1} parent=47 // pred_check
          %p2011 = pneg %p153
        $region50: #{_forward_impl.1} parent=47 // pred_check_branch
          %2013 = sbr.rel (%p2011) target = $region52
        $region51: #{_forward_impl.1} parent=47 // pred_region
          %s2014 = sand.u32 %s138, 1
          %s2015 = scalar_lea.sflag [#allocation4], %s2014
          %s2016 = sand.u32 %s138, 1
          %s2017 = scalar_lea.vmem [#allocation3], %s2016
          %2018 = dma.done %s2015, 16
        $region52: #{_forward_impl.1} parent=47 // pred_fallthru
          _
      $region48: #{_forward_impl.1} parent=5 // pred_fallthru
        _
    $region6: #{_forward_impl.1} parent=1 // loop_footer
      %s18 = sadd.s32 1, %s14
    $region7: #{_forward_impl.1} parent=1 // loop_footer_branch
      %13 = sbr.rel target = $region3
    $region8: #{_forward_impl.1} parent=1 // loop_exit
      _
    %2019 = vsyncpa [#allocation4], 1
    %s2020 = scalar_lea.sflag [#allocation4], 1
    %2021 = vsyncpa %s2020, 1

</llo_original>
